<compile_context>
chip_gen: v6e
topology: v6e:2x2x1
jax: 0.10.0
libtpu: 0.0.40
codegen_flags: <defaults>
</compile_context>

<pallas_src>
import functools
import math

import numpy as np

import jax
import jax.numpy as jnp
from jax import lax
from jax.experimental import pallas as pl
from jax.experimental.pallas import tpu as pltpu


def _cdiv(a, b):
    return -(-a // b)


def _round_up(x, n):
    return _cdiv(x, n) * n


def _sinusoidal_kernel(p_ref, rep_ref, phase_ref, o_ref, *, chunk, n_chunks):
    # p_ref:     (TILE_R, m)     f32, m positions per output row
    # rep_ref:   (m, m*K2)       f32, block-diagonal: rep[i, i*K2 + j] = 2**(j//2)
    # phase_ref: (1, m*K2)       f32, (j % 2) * pi/2, tiled m times
    # o_ref:     (TILE_R, m*K2)  out_dtype, lane-dense output block (m*K2 % 128 == 0)
    rep = rep_ref[...]       # hoisted out of the chunk loop (no per-iter reload)
    phase = phase_ref[...]

    # Statically unrolled sub-chunk loop (equivalent to lax.fori_loop(...,
    # unroll=True)): keeps the f32 matmul+sin intermediate at ~chunk rows
    # instead of the full tile (review item 6).
    for c in range(n_chunks):
        r0 = c * chunk
        p_blk = p_ref[pl.ds(r0, chunk), :]                      # (chunk, m) f32
        # Exact 3-pass f32 matmul: split p into three bf16-exact terms and run
        # three single-pass (DEFAULT) MXU matmuls.  Half of HIGHEST's MXU work
        # (review item 4) while p * 2**k stays f32-exact because rep's entries
        # are powers of two.
        p_hi = p_blk.astype(jnp.bfloat16).astype(jnp.float32)
        r1 = p_blk - p_hi
        p_mid = r1.astype(jnp.bfloat16).astype(jnp.float32)
        p_lo = r1 - p_mid
        mm = lambda x: jnp.dot(x, rep, preferred_element_type=jnp.float32,
                               precision=lax.Precision.DEFAULT)
        scaled = (mm(p_hi) + mm(p_mid)) + mm(p_lo)              # == p * 2**(j//2)
        # cos(x) = sin(x + pi/2): a single transcendental per element.
        # TODO(synk): if v7x profiling shows jnp.sin lowers to a VPU polynomial
        # (VALU-bound), move the 3-way accumulation back into the MXU (a K=3m
        # concatenated single dot or Precision.HIGH) to shave 2 VPU adds/element.
        o_ref[pl.ds(r0, chunk), :] = jnp.sin(scaled + phase).astype(o_ref.dtype)


@functools.lru_cache(maxsize=None)
def _constants(n_dim, m):
    """Host-built, cached per (n_dim, m) (review item 8)."""
    k2 = 2 * n_dim
    j = np.arange(k2)
    freq = np.exp2(j // 2).astype(np.float32)                    # 2**(i//2), exact
    rep = np.kron(np.eye(m, dtype=np.float32), freq[None, :])    # (m, m*k2)
    phase = np.tile((j % 2).astype(np.float32) * (np.pi / 2), m)[None, :]
    return jnp.asarray(rep), jnp.asarray(phase)


def sinusoidal_embedding(p, n_dim, *, out_dtype=jnp.float32,
                         target_tile_bytes=8 << 20, sub_rows=256,
                         vmem_limit_bytes=40 << 20):
    """p: (B, D) -> (B, D * 2 * n_dim), PyTorch-identical layout.

    out_dtype=jnp.bfloat16 halves the dominant output HBM writeback (the sin
    argument math always stays f32); default f32 matches the PyTorch module.
    """
    B, D = p.shape
    K2 = 2 * n_dim
    N = B * D

    # Positions per output row: base makes the lane extent a multiple of 128;
    # grow to <=64 for input lane density, preferring a divisor of N so the
    # padded-tail copy is skipped.
    base = 128 // math.gcd(K2, 128)
    cands = [base * k for k in range(64 // base, 0, -1)]         # descending, <= 64
    m = next((c for c in cands if N % c == 0), cands[0])
    lanes = m * K2

    itemsize = np.dtype(out_dtype).itemsize
    r_align = max(8, 32 // itemsize)        # 8 rows (f32) / 16 rows (bf16 packing)

    rows_needed = _cdiv(N, m)
    rows = _round_up(rows_needed, r_align)

    # ~8 MiB output tiles amortize the ~0.35us per-grid-step overhead; VMEM
    # limit raised explicitly (v5e scoped default is only 16 MiB).
    row_bytes = lanes * itemsize
    tile_r = max(r_align,
                 min(8192, (target_tile_bytes // row_bytes) // r_align * r_align))
    tile_r = min(tile_r, rows)
    sub = max(r_align, (sub_rows // r_align) * r_align)
    if tile_r >= sub:
        tile_r = (tile_r // sub) * sub
        chunk = sub
    else:
        chunk = tile_r
    n_chunks = tile_r // chunk

    p_flat = p.reshape(-1).astype(jnp.float32)
    n_pad = rows * m
    if n_pad != N:
        p_flat = jnp.pad(p_flat, (0, n_pad - N))
    p2d = p_flat.reshape(rows, m)            # contiguous reshape, no relayout

    rep, phase = _constants(n_dim, m)

    kernel = functools.partial(_sinusoidal_kernel, chunk=chunk, n_chunks=n_chunks)
    out2d = pl.pallas_call(
        kernel,
        out_shape=jax.ShapeDtypeStruct((rows, lanes), out_dtype),
        grid=(_cdiv(rows, tile_r),),
        in_specs=[
            pl.BlockSpec((tile_r, m), lambda i: (i, 0)),
            pl.BlockSpec((m, lanes), lambda i: (0, 0)),      # resident constant
            pl.BlockSpec((1, lanes), lambda i: (0, 0)),      # resident constant
        ],
        out_specs=pl.BlockSpec((tile_r, lanes), lambda i: (i, 0)),
        compiler_params=pltpu.CompilerParams(
            dimension_semantics=("parallel",),               # v7x: 2 TCs split rows
            vmem_limit_bytes=vmem_limit_bytes),
    )(p2d, rep, phase)

    # Flat element order of (rows, lanes) is identical to (B, D*K2): reshapes
    # below are free contiguous reshapes.
    out_flat = out2d.reshape(-1)
    if n_pad != N:
        # TODO(synk): this slice re-materializes the full output in HBM; for
        # production shapes arrange N % (r_align * m) == 0 (true for typical
        # NeRF ray batches) so it is skipped, or fuse it into the consumer.
        out_flat = out_flat[: N * K2]
    return out_flat.reshape(B, D * K2)


def _reference(p, n_dim):
    """Pure-JAX reference matching the PyTorch forward."""
    B, D = p.shape
    K2 = 2 * n_dim
    exp = jnp.asarray([2.0 ** (i // 2) for i in range(K2)],
                      dtype=jnp.float32).reshape(1, 1, K2)
    scaled = (p[:, :, None].astype(jnp.float32) * exp).reshape(B, D * K2)
    j = jnp.arange(D * K2)
    return jnp.where(j % 2 == 0, jnp.sin(scaled), jnp.cos(scaled))


if __name__ == "__main__":
    k0, k1, k2 = jax.random.split(jax.random.PRNGKey(0), 3)

    # 1) NeRF-like xyz input, f32 output (module-exact dtype), ragged N
    #    (exercises the padded-tail path).
    n_dim, B, D = 8, 2, 3
    p = jax.random.uniform(k0, (B, D), dtype=jnp.float32, minval=-1.0, maxval=1.0)
    out = jax.block_until_ready(sinusoidal_embedding(p, n_dim))
    ref = _reference(p, n_dim)
    assert out.shape == (B, D * 2 * n_dim) and out.dtype == jnp.float32
    assert jnp.allclose(out, ref, atol=1e-4, rtol=1e-5), \
        float(jnp.max(jnp.abs(out - ref)))

    # 2) bf16 output writeback (review item 1); N divisible by m.
    n_dim, B, D = 8, 64, 8
    p = jax.random.uniform(k1, (B, D), dtype=jnp.float32, minval=-1.0, maxval=1.0)
    out_bf16 = jax.block_until_ready(
        sinusoidal_embedding(p, n_dim, out_dtype=jnp.bfloat16))
    ref = _reference(p, n_dim)
    assert out_bf16.dtype == jnp.bfloat16
    assert jnp.allclose(out_bf16.astype(jnp.float32), ref, atol=8e-3), \
        float(jnp.max(jnp.abs(out_bf16.astype(jnp.float32) - ref)))

    # 3) Multi-step grid + multi-chunk in-kernel loop + partial final block,
    #    different n_dim (small tile sizes forced to exercise those paths).
    n_dim, B, D = 4, 8, 256
    p = jax.random.uniform(k2, (B, D), dtype=jnp.float32, minval=-2.0, maxval=2.0)
    out = jax.block_until_ready(
        sinusoidal_embedding(p, n_dim, target_tile_bytes=48 * 1024, sub_rows=8))
    ref = _reference(p, n_dim)
    assert out.shape == (B, D * 2 * n_dim)
    assert jnp.allclose(out, ref, atol=1e-4, rtol=1e-5), \
        float(jnp.max(jnp.abs(out - ref)))

    print("KERNEL_OK")
</pallas_src>

<mosaic_0001>
module attributes {stable_mosaic.version = 11 : i64} {
  func.func @_sinusoidal_kernel(%arg0: i32, %arg1: memref<8x64xf32, #tpu.memory_space<vmem>>, %arg2: memref<64x1024xf32, #tpu.memory_space<vmem>>, %arg3: memref<1x1024xf32, #tpu.memory_space<vmem>>, %arg4: memref<8x1024xf32, #tpu.memory_space<vmem>>) attributes {dimension_semantics = [#tpu.dimension_semantics<parallel>], iteration_bounds = array<i64: 1>, scalar_prefetch = 0 : i64, scratch_operands = 0 : i64, tpu.core_type = #tpu.core_type<tc>, window_params = [{transform_indices = @transform_0, window_bounds = array<i64: 8, 64>}, {pipeline_mode = #tpu.pipeline_mode<synchronous>, transform_indices = @transform_1, window_bounds = array<i64: 64, 1024>}, {pipeline_mode = #tpu.pipeline_mode<synchronous>, transform_indices = @transform_2, window_bounds = array<i64: 1, 1024>}, {transform_indices = @transform_3, window_bounds = array<i64: 8, 1024>}]} {
    %c0 = arith.constant 0 : index
    %c0_0 = arith.constant 0 : index
    %0 = vector.load %arg2[%c0, %c0_0] : memref<64x1024xf32, #tpu.memory_space<vmem>>, vector<64x1024xf32>
    %c0_1 = arith.constant 0 : index
    %c0_2 = arith.constant 0 : index
    %1 = vector.load %arg3[%c0_1, %c0_2] : memref<1x1024xf32, #tpu.memory_space<vmem>>, vector<1x1024xf32>
    %c0_3 = arith.constant 0 : index
    %c0_4 = arith.constant 0 : index
    %2 = vector.load %arg1[%c0_3, %c0_4] : memref<8x64xf32, #tpu.memory_space<vmem>>, vector<8x64xf32>
    %3 = arith.truncf %2 : vector<8x64xf32> to vector<8x64xbf16>
    %4 = arith.extf %3 : vector<8x64xbf16> to vector<8x64xf32>
    %5 = arith.subf %2, %4 : vector<8x64xf32>
    %6 = arith.truncf %5 : vector<8x64xf32> to vector<8x64xbf16>
    %7 = arith.extf %6 : vector<8x64xbf16> to vector<8x64xf32>
    %8 = arith.subf %5, %7 : vector<8x64xf32>
    %cst = arith.constant dense<0.000000e+00> : vector<8x1024xf32>
    %9 = tpu.matmul %4, %0, %cst {dimension_numbers = #tpu.dot_dimension_numbers<[1], [0], [0], [1], [0, 0, 1, 1], [], []>} : vector<8x64xf32>, vector<64x1024xf32>, vector<8x1024xf32> -> vector<8x1024xf32>
    %cst_5 = arith.constant dense<0.000000e+00> : vector<8x1024xf32>
    %10 = tpu.matmul %7, %0, %cst_5 {dimension_numbers = #tpu.dot_dimension_numbers<[1], [0], [0], [1], [0, 0, 1, 1], [], []>} : vector<8x64xf32>, vector<64x1024xf32>, vector<8x1024xf32> -> vector<8x1024xf32>
    %11 = arith.addf %9, %10 : vector<8x1024xf32>
    %cst_6 = arith.constant dense<0.000000e+00> : vector<8x1024xf32>
    %12 = tpu.matmul %8, %0, %cst_6 {dimension_numbers = #tpu.dot_dimension_numbers<[1], [0], [0], [1], [0, 0, 1, 1], [], []>} : vector<8x64xf32>, vector<64x1024xf32>, vector<8x1024xf32> -> vector<8x1024xf32>
    %13 = arith.addf %11, %12 : vector<8x1024xf32>
    %14 = vector.broadcast %1 : vector<1x1024xf32> to vector<8x1024xf32>
    %15 = arith.addf %13, %14 : vector<8x1024xf32>
    %16 = math.sin %15 : vector<8x1024xf32>
    %c0_7 = arith.constant 0 : index
    %c0_8 = arith.constant 0 : index
    %17 = vector.load %arg4[%c0_7, %c0_8] : memref<8x1024xf32, #tpu.memory_space<vmem>>, vector<8x1024xf32>
    tpu.vector_store %arg4[%c0_7, %c0_8], %16 {strides = array<i32>} : memref<8x1024xf32, #tpu.memory_space<vmem>>, vector<8x1024xf32>,
    return
  }
  func.func @transform_0(%arg0: i32) -> (i32, i32) {
    %c0_i32 = arith.constant 0 : i32
    %c0_i32_0 = arith.constant 0 : i32
    return %arg0, %c0_i32 : i32, i32
  }
  func.func @transform_1(%arg0: i32) -> (i32, i32) {
    %c0_i32 = arith.constant 0 : i32
    %c0_i32_0 = arith.constant 0 : i32
    %c0_i32_1 = arith.constant 0 : i32
    return %c0_i32, %c0_i32_0 : i32, i32
  }
  func.func @transform_2(%arg0: i32) -> (i32, i32) {
    %c0_i32 = arith.constant 0 : i32
    %c0_i32_0 = arith.constant 0 : i32
    %c0_i32_1 = arith.constant 0 : i32
    return %c0_i32, %c0_i32_0 : i32, i32
  }
  func.func @transform_3(%arg0: i32) -> (i32, i32) {
    %c0_i32 = arith.constant 0 : i32
    %c0_i32_0 = arith.constant 0 : i32
    return %arg0, %c0_i32 : i32, i32
  }
}

</mosaic_0001>

<llo_original>
// kernel: tpu_custom_call.1
$region0: #{tpu_custom_call.1}
  #allocation0 [shape = 'u32[]', space=smem, size = 0x4, offset = 0x4, fixed_abs, tag = 'smem constant byte address 0x4 - core index']
  #allocation1 [shape = 'u32[144,128]{1,0:T(1,128)}', space=vmem, size = 0x12000, scoped, tag = 'internal scratch']
  %s0 = inlined_call_operand.hbm [shape: f32[8,64], index: 0, kind: input, shape index: {}]
  %s1 = inlined_call_operand.hbm [shape: f32[64,1024], index: 1, kind: input, shape index: {}]
  %s2 = inlined_call_operand.hbm [shape: f32[1,1024], index: 2, kind: input, shape index: {}]
  %s3 = inlined_call_operand.hbm [shape: f32[8,1024], index: 3, kind: output, shape index: {}]
  %s4 = sld [smem:[#allocation0]]
  $region34: #{tpu_custom_call.1} parent=0
    _
  %s6 = ssub.s32 1, %s4
  %s7 = scalar_select 0, %s6, %s4
  $region1: #{tpu_custom_call.1} parent=0
    #allocation2 [shape = 'u8[4096]{0}', space=vmem, size = 0x1000, scoped, tag = 'input window, operand 0, single buffered']
    #allocation3 [shape = 's32[1]{0}', space=sflag, size = 0x4, scoped, tag = 'scoped memory for tpu_custom_call.1']
    #allocation4 [shape = 's32[1]{0}', space=sflag, size = 0x4, scoped, tag = 'scoped memory for tpu_custom_call.1']
    #allocation5 [shape = 'u8[262144]{0}', space=vmem, size = 0x40000, scoped, tag = 'input window, operand 1, single buffered']
    #allocation6 [shape = 's32[1]{0}', space=sflag, size = 0x4, scoped, tag = 'scoped memory for tpu_custom_call.1']
    #allocation7 [shape = 'u8[4096]{0}', space=vmem, size = 0x1000, scoped, tag = 'input window, operand 2, single buffered']
    #allocation8 [shape = 'u8[32768]{0}', space=vmem, size = 0x8000, scoped, tag = 'output window, operand 0, single buffered']
    %8 = vsyncpa [#allocation3], 0
    %9 = vsyncpa [#allocation6], 0
    %10 = vsyncpa [#allocation4], 0
    // Predicated region
    $region2: #{tpu_custom_call.1} parent=1 // pred_check
      _
    $region3: #{tpu_custom_call.1} parent=1 // pred_check_branch
      %12 = sbr.rel (0) target = $region5
    $region4: #{tpu_custom_call.1} parent=1 // pred_region
      %s14 = ssub.s32 128, 128
      %15 = vsyncadd [#allocation3], %s14
      %s17 = sshll.u32 [#allocation2], 4
      %s18 = int_to_ptr.vmem [resolvable:$true] %s17
      %20 = dma.hbm_to_vmem [thread:$0]  %s0, 128, %s18, [#allocation3]
    $region5: #{tpu_custom_call.1} parent=1 // pred_fallthru
      _
    // Predicated region
    $region6: #{tpu_custom_call.1} parent=1 // pred_check
      _
    $region7: #{tpu_custom_call.1} parent=1 // pred_check_branch
      %22 = sbr.rel (0) target = $region9
    $region8: #{tpu_custom_call.1} parent=1 // pred_region
      %s24 = ssub.s32 8192, 8192
      %25 = vsyncadd [#allocation6], %s24
      %s26 = sshll.u32 [#allocation5], 4
      %s27 = int_to_ptr.vmem [resolvable:$true] %s26
      %32 = dma.hbm_to_vmem [thread:$0]  %s1, 8192, %s27, [#allocation6], 1024, 1024, 64
    $region9: #{tpu_custom_call.1} parent=1 // pred_fallthru
      _
    // Predicated region
    $region10: #{tpu_custom_call.1} parent=1 // pred_check
      _
    $region11: #{tpu_custom_call.1} parent=1 // pred_check_branch
      %34 = sbr.rel (0) target = $region13
    $region12: #{tpu_custom_call.1} parent=1 // pred_region
      %s36 = ssub.s32 128, 128
      %37 = vsyncadd [#allocation6], %s36
      %s39 = sshll.u32 [#allocation7], 4
      %s40 = int_to_ptr.vmem [resolvable:$true] %s39
      %42 = dma.hbm_to_vmem [thread:$0]  %s2, 128, %s40, [#allocation6]
    $region13: #{tpu_custom_call.1} parent=1 // pred_fallthru
      _
    // Predicated region
    $region14: #{tpu_custom_call.1} parent=1 // pred_check
      _
    $region15: #{tpu_custom_call.1} parent=1 // pred_check_branch
      %44 = sbr.rel (0) target = $region17
    $region16: #{tpu_custom_call.1} parent=1 // pred_region
      %45 = dma.done [#allocation3], 128
    $region17: #{tpu_custom_call.1} parent=1 // pred_fallthru
      _
    // Predicated region
    $region18: #{tpu_custom_call.1} parent=1 // pred_check
      _
    $region19: #{tpu_custom_call.1} parent=1 // pred_check_branch
      %47 = sbr.rel (0) target = $region21
    $region20: #{tpu_custom_call.1} parent=1 // pred_region
      %48 = dma.done [#allocation6], 8192
    $region21: #{tpu_custom_call.1} parent=1 // pred_fallthru
      _
    // Predicated region
    $region22: #{tpu_custom_call.1} parent=1 // pred_check
      _
    $region23: #{tpu_custom_call.1} parent=1 // pred_check_branch
      %50 = sbr.rel (0) target = $region25
    $region24: #{tpu_custom_call.1} parent=1 // pred_region
      %51 = dma.done [#allocation6], 128
    $region25: #{tpu_custom_call.1} parent=1 // pred_fallthru
      _
    %v52 = vld [vmem:[#allocation5] sm:$0xff]
    %v53 = vld [vmem:[#allocation5 + $0x8] sm:$0xff]
    %v54 = vld [vmem:[#allocation5 + $0x10] sm:$0xff]
    %v55 = vld [vmem:[#allocation5 + $0x18] sm:$0xff]
    %v56 = vld [vmem:[#allocation5 + $0x20] sm:$0xff]
    %v57 = vld [vmem:[#allocation5 + $0x28] sm:$0xff]
    %v58 = vld [vmem:[#allocation5 + $0x30] sm:$0xff]
    %v59 = vld [vmem:[#allocation5 + $0x38] sm:$0xff]
    %v60 = vld [vmem:[#allocation5 + $0x40] sm:$0xff]
    %v61 = vld [vmem:[#allocation5 + $0x48] sm:$0xff]
    %v62 = vld [vmem:[#allocation5 + $0x50] sm:$0xff]
    %v63 = vld [vmem:[#allocation5 + $0x58] sm:$0xff]
    %v64 = vld [vmem:[#allocation5 + $0x60] sm:$0xff]
    %v65 = vld [vmem:[#allocation5 + $0x68] sm:$0xff]
    %v66 = vld [vmem:[#allocation5 + $0x70] sm:$0xff]
    %v67 = vld [vmem:[#allocation5 + $0x78] sm:$0xff]
    %v68 = vld [vmem:[#allocation5 + $0x80] sm:$0xff]
    %v69 = vld [vmem:[#allocation5 + $0x88] sm:$0xff]
    %v70 = vld [vmem:[#allocation5 + $0x90] sm:$0xff]
    %v71 = vld [vmem:[#allocation5 + $0x98] sm:$0xff]
    %v72 = vld [vmem:[#allocation5 + $0xa0] sm:$0xff]
    %v73 = vld [vmem:[#allocation5 + $0xa8] sm:$0xff]
    %v74 = vld [vmem:[#allocation5 + $0xb0] sm:$0xff]
    %v75 = vld [vmem:[#allocation5 + $0xb8] sm:$0xff]
    %v76 = vld [vmem:[#allocation5 + $0xc0] sm:$0xff]
    %v77 = vld [vmem:[#allocation5 + $0xc8] sm:$0xff]
    %v78 = vld [vmem:[#allocation5 + $0xd0] sm:$0xff]
    %v79 = vld [vmem:[#allocation5 + $0xd8] sm:$0xff]
    %v80 = vld [vmem:[#allocation5 + $0xe0] sm:$0xff]
    %v81 = vld [vmem:[#allocation5 + $0xe8] sm:$0xff]
    %v82 = vld [vmem:[#allocation5 + $0xf0] sm:$0xff]
    %v83 = vld [vmem:[#allocation5 + $0xf8] sm:$0xff]
    %v84 = vld [vmem:[#allocation5 + $0x100] sm:$0xff]
    %v85 = vld [vmem:[#allocation5 + $0x108] sm:$0xff]
    %v86 = vld [vmem:[#allocation5 + $0x110] sm:$0xff]
    %v87 = vld [vmem:[#allocation5 + $0x118] sm:$0xff]
    %v88 = vld [vmem:[#allocation5 + $0x120] sm:$0xff]
    %v89 = vld [vmem:[#allocation5 + $0x128] sm:$0xff]
    %v90 = vld [vmem:[#allocation5 + $0x130] sm:$0xff]
    %v91 = vld [vmem:[#allocation5 + $0x138] sm:$0xff]
    %v92 = vld [vmem:[#allocation5 + $0x140] sm:$0xff]
    %v93 = vld [vmem:[#allocation5 + $0x148] sm:$0xff]
    %v94 = vld [vmem:[#allocation5 + $0x150] sm:$0xff]
    %v95 = vld [vmem:[#allocation5 + $0x158] sm:$0xff]
    %v96 = vld [vmem:[#allocation5 + $0x160] sm:$0xff]
    %v97 = vld [vmem:[#allocation5 + $0x168] sm:$0xff]
    %v98 = vld [vmem:[#allocation5 + $0x170] sm:$0xff]
    %v99 = vld [vmem:[#allocation5 + $0x178] sm:$0xff]
    %v100 = vld [vmem:[#allocation5 + $0x180] sm:$0xff]
    %v101 = vld [vmem:[#allocation5 + $0x188] sm:$0xff]
    %v102 = vld [vmem:[#allocation5 + $0x190] sm:$0xff]
    %v103 = vld [vmem:[#allocation5 + $0x198] sm:$0xff]
    %v104 = vld [vmem:[#allocation5 + $0x1a0] sm:$0xff]
    %v105 = vld [vmem:[#allocation5 + $0x1a8] sm:$0xff]
    %v106 = vld [vmem:[#allocation5 + $0x1b0] sm:$0xff]
    %v107 = vld [vmem:[#allocation5 + $0x1b8] sm:$0xff]
    %v108 = vld [vmem:[#allocation5 + $0x1c0] sm:$0xff]
    %v109 = vld [vmem:[#allocation5 + $0x1c8] sm:$0xff]
    %v110 = vld [vmem:[#allocation5 + $0x1d0] sm:$0xff]
    %v111 = vld [vmem:[#allocation5 + $0x1d8] sm:$0xff]
    %v112 = vld [vmem:[#allocation5 + $0x1e0] sm:$0xff]
    %v113 = vld [vmem:[#allocation5 + $0x1e8] sm:$0xff]
    %v114 = vld [vmem:[#allocation5 + $0x1f0] sm:$0xff]
    %v115 = vld [vmem:[#allocation5 + $0x1f8] sm:$0xff]
    %v116 = vld [vmem:[#allocation7] sm:$0xff]
    %v117 = vld [vmem:[#allocation2] sm:$0xff]
    %v118 = vpack.c.bf16 %v117, %v117
    %v119 = vunpack.c.l.bf16 %v118
    %v120 = vsub.f32 %v117, %v119
    %v121 = vpack.c.bf16 %v120, %v120
    %v122 = vunpack.c.l.bf16 %v121
    %v123 = vsub.f32 %v120, %v122
    %vm124 = vcmask 523264
    %v126 = vsel %vm124, %v122, 0
    %128 = vmatprep.subr.mxu0 0.0
    %129 = vmatpush1.msra.mxu0 0.0
    %130 = vmatprep.subr.mxu0 0.0
    %131 = vmatpush1.msra.mxu0 0.0
    %132 = vmatprep.subr.mxu0 0.0
    %133 = vmatpush1.msra.mxu0 0.0
    %134 = vmatprep.subr.mxu0 0.0
    %135 = vmatpush1.msra.mxu0 0.0
    %136 = vmatprep.subr.mxu0 0.0
    %137 = vmatpush1.msra.mxu0 0.0
    %138 = vmatprep.subr.mxu0 0.0
    %139 = vmatpush1.msra.mxu0 0.0
    %140 = vmatprep.subr.mxu0 0.0
    %141 = vmatpush1.msra.mxu0 0.0
    %142 = vmatprep.subr.mxu0 0.0
    %143 = vmatpush1.msra.mxu0 0.0
    %144 = vmatprep.subr.mxu0 %v109
    %145 = vmatpush1.msra.mxu0 %v108
    %146 = vmatprep.subr.mxu0 %v101
    %147 = vmatpush1.msra.mxu0 %v100
    %148 = vmatprep.subr.mxu0 %v93
    %149 = vmatpush1.msra.mxu0 %v92
    %150 = vmatprep.subr.mxu0 %v85
    %151 = vmatpush1.msra.mxu0 %v84
    %152 = vmatprep.subr.mxu0 %v77
    %153 = vmatpush1.msra.mxu0 %v76
    %154 = vmatprep.subr.mxu0 %v69
    %155 = vmatpush1.msra.mxu0 %v68
    %156 = vmatprep.subr.mxu0 %v61
    %157 = vmatpush1.msra.mxu0 %v60
    %158 = vmatprep.subr.mxu0 %v53
    %159 = vmatpush1.msra.mxu0 %v52
    %160 = vmatprep.subr.mxu0 0.0
    %161 = vmatpush2.msra.mxu0 0.0
    %162 = vmatprep.subr.mxu0 0.0
    %163 = vmatpush2.msra.mxu0 0.0
    %164 = vmatprep.subr.mxu0 0.0
    %165 = vmatpush2.msra.mxu0 0.0
    %166 = vmatprep.subr.mxu0 0.0
    %167 = vmatpush2.msra.mxu0 0.0
    %168 = vmatprep.subr.mxu0 0.0
    %169 = vmatpush2.msra.mxu0 0.0
    %170 = vmatprep.subr.mxu0 0.0
    %171 = vmatpush2.msra.mxu0 0.0
    %172 = vmatprep.subr.mxu0 0.0
    %173 = vmatpush2.msra.mxu0 0.0
    %174 = vmatprep.subr.mxu0 0.0
    %175 = vmatpush2.msra.mxu0 0.0
    %176 = vmatprep.subr.mxu0 0.0
    %177 = vmatpush2.msra.mxu0 0.0
    %178 = vmatprep.subr.mxu0 0.0
    %179 = vmatpush2.msra.mxu0 0.0
    %180 = vmatprep.subr.mxu0 0.0
    %181 = vmatpush2.msra.mxu0 0.0
    %182 = vmatprep.subr.mxu0 0.0
    %183 = vmatpush2.msra.mxu0 0.0
    %184 = vmatprep.subr.mxu0 0.0
    %185 = vmatpush2.msra.mxu0 0.0
    %186 = vmatprep.subr.mxu0 0.0
    %187 = vmatpush2.msra.mxu0 0.0
    %188 = vmatprep.subr.mxu0 0.0
    %189 = vmatpush2.msra.mxu0 0.0
    %190 = vmatprep.subr.mxu0 0.0
    %191 = vmatpush2.msra.mxu0 0.0
    %192 = vmatprep.mubr.f32.mxu0 0.0
    %193 = vmatmul.mubr.f32.gmra.mxu0 %v126
    %v194 = vpop.f32.mrf.mxu0
    %v195 = vadd.f32 0.0, %v194
    %v196 = vpop.f32.mrf.mxu0
    %v197 = vadd.f32 0.0, %v196
    %198 = vdwg.mxu0
    %199 = vmatprep.subr.mxu0 0.0
    %200 = vmatpush1.msra.mxu0 0.0
    %201 = vmatprep.subr.mxu0 0.0
    %202 = vmatpush1.msra.mxu0 0.0
    %203 = vmatprep.subr.mxu0 0.0
    %204 = vmatpush1.msra.mxu0 0.0
    %205 = vmatprep.subr.mxu0 0.0
    %206 = vmatpush1.msra.mxu0 0.0
    %207 = vmatprep.subr.mxu0 0.0
    %208 = vmatpush1.msra.mxu0 0.0
    %209 = vmatprep.subr.mxu0 0.0
    %210 = vmatpush1.msra.mxu0 0.0
    %211 = vmatprep.subr.mxu0 0.0
    %212 = vmatpush1.msra.mxu0 0.0
    %213 = vmatprep.subr.mxu0 0.0
    %214 = vmatpush1.msra.mxu0 0.0
    %215 = vmatprep.subr.mxu0 %v111
    %216 = vmatpush1.msra.mxu0 %v110
    %217 = vmatprep.subr.mxu0 %v103
    %218 = vmatpush1.msra.mxu0 %v102
    %219 = vmatprep.subr.mxu0 %v95
    %220 = vmatpush1.msra.mxu0 %v94
    %221 = vmatprep.subr.mxu0 %v87
    %222 = vmatpush1.msra.mxu0 %v86
    %223 = vmatprep.subr.mxu0 %v79
    %224 = vmatpush1.msra.mxu0 %v78
    %225 = vmatprep.subr.mxu0 %v71
    %226 = vmatpush1.msra.mxu0 %v70
    %227 = vmatprep.subr.mxu0 %v63
    %228 = vmatpush1.msra.mxu0 %v62
    %229 = vmatprep.subr.mxu0 %v55
    %230 = vmatpush1.msra.mxu0 %v54
    %231 = vmatprep.subr.mxu0 0.0
    %232 = vmatpush2.msra.mxu0 0.0
    %233 = vmatprep.subr.mxu0 0.0
    %234 = vmatpush2.msra.mxu0 0.0
    %235 = vmatprep.subr.mxu0 0.0
    %236 = vmatpush2.msra.mxu0 0.0
    %237 = vmatprep.subr.mxu0 0.0
    %238 = vmatpush2.msra.mxu0 0.0
    %239 = vmatprep.subr.mxu0 0.0
    %240 = vmatpush2.msra.mxu0 0.0
    %241 = vmatprep.subr.mxu0 0.0
    %242 = vmatpush2.msra.mxu0 0.0
    %243 = vmatprep.subr.mxu0 0.0
    %244 = vmatpush2.msra.mxu0 0.0
    %245 = vmatprep.subr.mxu0 0.0
    %246 = vmatpush2.msra.mxu0 0.0
    %247 = vmatprep.subr.mxu0 0.0
    %248 = vmatpush2.msra.mxu0 0.0
    %249 = vmatprep.subr.mxu0 0.0
    %250 = vmatpush2.msra.mxu0 0.0
    %251 = vmatprep.subr.mxu0 0.0
    %252 = vmatpush2.msra.mxu0 0.0
    %253 = vmatprep.subr.mxu0 0.0
    %254 = vmatpush2.msra.mxu0 0.0
    %255 = vmatprep.subr.mxu0 0.0
    %256 = vmatpush2.msra.mxu0 0.0
    %257 = vmatprep.subr.mxu0 0.0
    %258 = vmatpush2.msra.mxu0 0.0
    %259 = vmatprep.subr.mxu0 0.0
    %260 = vmatpush2.msra.mxu0 0.0
    %261 = vmatprep.subr.mxu0 0.0
    %262 = vmatpush2.msra.mxu0 0.0
    %263 = vmatprep.mubr.f32.mxu0 0.0
    %264 = vmatmul.mubr.f32.gmra.mxu0 %v126
    %v265 = vpop.f32.mrf.mxu0
    %v266 = vadd.f32 0.0, %v265
    %v267 = vpop.f32.mrf.mxu0
    %v268 = vadd.f32 0.0, %v267
    %269 = vdwg.mxu0
    %270 = vmatprep.subr.mxu0 0.0
    %271 = vmatpush1.msra.mxu0 0.0
    %272 = vmatprep.subr.mxu0 0.0
    %273 = vmatpush1.msra.mxu0 0.0
    %274 = vmatprep.subr.mxu0 0.0
    %275 = vmatpush1.msra.mxu0 0.0
    %276 = vmatprep.subr.mxu0 0.0
    %277 = vmatpush1.msra.mxu0 0.0
    %278 = vmatprep.subr.mxu0 0.0
    %279 = vmatpush1.msra.mxu0 0.0
    %280 = vmatprep.subr.mxu0 0.0
    %281 = vmatpush1.msra.mxu0 0.0
    %282 = vmatprep.subr.mxu0 0.0
    %283 = vmatpush1.msra.mxu0 0.0
    %284 = vmatprep.subr.mxu0 0.0
    %285 = vmatpush1.msra.mxu0 0.0
    %286 = vmatprep.subr.mxu0 %v113
    %287 = vmatpush1.msra.mxu0 %v112
    %288 = vmatprep.subr.mxu0 %v105
    %289 = vmatpush1.msra.mxu0 %v104
    %290 = vmatprep.subr.mxu0 %v97
    %291 = vmatpush1.msra.mxu0 %v96
    %292 = vmatprep.subr.mxu0 %v89
    %293 = vmatpush1.msra.mxu0 %v88
    %294 = vmatprep.subr.mxu0 %v81
    %295 = vmatpush1.msra.mxu0 %v80
    %296 = vmatprep.subr.mxu0 %v73
    %297 = vmatpush1.msra.mxu0 %v72
    %298 = vmatprep.subr.mxu0 %v65
    %299 = vmatpush1.msra.mxu0 %v64
    %300 = vmatprep.subr.mxu0 %v57
    %301 = vmatpush1.msra.mxu0 %v56
    %302 = vmatprep.subr.mxu0 0.0
    %303 = vmatpush2.msra.mxu0 0.0
    %304 = vmatprep.subr.mxu0 0.0
    %305 = vmatpush2.msra.mxu0 0.0
    %306 = vmatprep.subr.mxu0 0.0
    %307 = vmatpush2.msra.mxu0 0.0
    %308 = vmatprep.subr.mxu0 0.0
    %309 = vmatpush2.msra.mxu0 0.0
    %310 = vmatprep.subr.mxu0 0.0
    %311 = vmatpush2.msra.mxu0 0.0
    %312 = vmatprep.subr.mxu0 0.0
    %313 = vmatpush2.msra.mxu0 0.0
    %314 = vmatprep.subr.mxu0 0.0
    %315 = vmatpush2.msra.mxu0 0.0
    %316 = vmatprep.subr.mxu0 0.0
    %317 = vmatpush2.msra.mxu0 0.0
    %318 = vmatprep.subr.mxu0 0.0
    %319 = vmatpush2.msra.mxu0 0.0
    %320 = vmatprep.subr.mxu0 0.0
    %321 = vmatpush2.msra.mxu0 0.0
    %322 = vmatprep.subr.mxu0 0.0
    %323 = vmatpush2.msra.mxu0 0.0
    %324 = vmatprep.subr.mxu0 0.0
    %325 = vmatpush2.msra.mxu0 0.0
    %326 = vmatprep.subr.mxu0 0.0
    %327 = vmatpush2.msra.mxu0 0.0
    %328 = vmatprep.subr.mxu0 0.0
    %329 = vmatpush2.msra.mxu0 0.0
    %330 = vmatprep.subr.mxu0 0.0
    %331 = vmatpush2.msra.mxu0 0.0
    %332 = vmatprep.subr.mxu0 0.0
    %333 = vmatpush2.msra.mxu0 0.0
    %334 = vmatprep.mubr.f32.mxu0 0.0
    %335 = vmatmul.mubr.f32.gmra.mxu0 %v126
    %v336 = vpop.f32.mrf.mxu0
    %v337 = vadd.f32 0.0, %v336
    %v338 = vpop.f32.mrf.mxu0
    %v339 = vadd.f32 0.0, %v338
    %340 = vdwg.mxu0
    %341 = vmatprep.subr.mxu0 0.0
    %342 = vmatpush1.msra.mxu0 0.0
    %343 = vmatprep.subr.mxu0 0.0
    %344 = vmatpush1.msra.mxu0 0.0
    %345 = vmatprep.subr.mxu0 0.0
    %346 = vmatpush1.msra.mxu0 0.0
    %347 = vmatprep.subr.mxu0 0.0
    %348 = vmatpush1.msra.mxu0 0.0
    %349 = vmatprep.subr.mxu0 0.0
    %350 = vmatpush1.msra.mxu0 0.0
    %351 = vmatprep.subr.mxu0 0.0
    %352 = vmatpush1.msra.mxu0 0.0
    %353 = vmatprep.subr.mxu0 0.0
    %354 = vmatpush1.msra.mxu0 0.0
    %355 = vmatprep.subr.mxu0 0.0
    %356 = vmatpush1.msra.mxu0 0.0
    %357 = vmatprep.subr.mxu0 %v115
    %358 = vmatpush1.msra.mxu0 %v114
    %359 = vmatprep.subr.mxu0 %v107
    %360 = vmatpush1.msra.mxu0 %v106
    %361 = vmatprep.subr.mxu0 %v99
    %362 = vmatpush1.msra.mxu0 %v98
    %363 = vmatprep.subr.mxu0 %v91
    %364 = vmatpush1.msra.mxu0 %v90
    %365 = vmatprep.subr.mxu0 %v83
    %366 = vmatpush1.msra.mxu0 %v82
    %367 = vmatprep.subr.mxu0 %v75
    %368 = vmatpush1.msra.mxu0 %v74
    %369 = vmatprep.subr.mxu0 %v67
    %370 = vmatpush1.msra.mxu0 %v66
    %371 = vmatprep.subr.mxu0 %v59
    %372 = vmatpush1.msra.mxu0 %v58
    %373 = vmatprep.subr.mxu0 0.0
    %374 = vmatpush2.msra.mxu0 0.0
    %375 = vmatprep.subr.mxu0 0.0
    %376 = vmatpush2.msra.mxu0 0.0
    %377 = vmatprep.subr.mxu0 0.0
    %378 = vmatpush2.msra.mxu0 0.0
    %379 = vmatprep.subr.mxu0 0.0
    %380 = vmatpush2.msra.mxu0 0.0
    %381 = vmatprep.subr.mxu0 0.0
    %382 = vmatpush2.msra.mxu0 0.0
    %383 = vmatprep.subr.mxu0 0.0
    %384 = vmatpush2.msra.mxu0 0.0
    %385 = vmatprep.subr.mxu0 0.0
    %386 = vmatpush2.msra.mxu0 0.0
    %387 = vmatprep.subr.mxu0 0.0
    %388 = vmatpush2.msra.mxu0 0.0
    %389 = vmatprep.subr.mxu0 0.0
    %390 = vmatpush2.msra.mxu0 0.0
    %391 = vmatprep.subr.mxu0 0.0
    %392 = vmatpush2.msra.mxu0 0.0
    %393 = vmatprep.subr.mxu0 0.0
    %394 = vmatpush2.msra.mxu0 0.0
    %395 = vmatprep.subr.mxu0 0.0
    %396 = vmatpush2.msra.mxu0 0.0
    %397 = vmatprep.subr.mxu0 0.0
    %398 = vmatpush2.msra.mxu0 0.0
    %399 = vmatprep.subr.mxu0 0.0
    %400 = vmatpush2.msra.mxu0 0.0
    %401 = vmatprep.subr.mxu0 0.0
    %402 = vmatpush2.msra.mxu0 0.0
    %403 = vmatprep.subr.mxu0 0.0
    %404 = vmatpush2.msra.mxu0 0.0
    %405 = vmatprep.mubr.f32.mxu0 0.0
    %406 = vmatmul.mubr.f32.gmra.mxu0 %v126
    %v407 = vpop.f32.mrf.mxu0
    %v408 = vadd.f32 0.0, %v407
    %v409 = vpop.f32.mrf.mxu0
    %v410 = vadd.f32 0.0, %v409
    %411 = vdwg.mxu0
    %v413 = vsel %vm124, %v119, 0
    %415 = vmatprep.subr.mxu0 0.0
    %416 = vmatpush1.msra.mxu0 0.0
    %417 = vmatprep.subr.mxu0 0.0
    %418 = vmatpush1.msra.mxu0 0.0
    %419 = vmatprep.subr.mxu0 0.0
    %420 = vmatpush1.msra.mxu0 0.0
    %421 = vmatprep.subr.mxu0 0.0
    %422 = vmatpush1.msra.mxu0 0.0
    %423 = vmatprep.subr.mxu0 0.0
    %424 = vmatpush1.msra.mxu0 0.0
    %425 = vmatprep.subr.mxu0 0.0
    %426 = vmatpush1.msra.mxu0 0.0
    %427 = vmatprep.subr.mxu0 0.0
    %428 = vmatpush1.msra.mxu0 0.0
    %429 = vmatprep.subr.mxu0 0.0
    %430 = vmatpush1.msra.mxu0 0.0
    %431 = vmatprep.subr.mxu0 %v109
    %432 = vmatpush1.msra.mxu0 %v108
    %433 = vmatprep.subr.mxu0 %v101
    %434 = vmatpush1.msra.mxu0 %v100
    %435 = vmatprep.subr.mxu0 %v93
    %436 = vmatpush1.msra.mxu0 %v92
    %437 = vmatprep.subr.mxu0 %v85
    %438 = vmatpush1.msra.mxu0 %v84
    %439 = vmatprep.subr.mxu0 %v77
    %440 = vmatpush1.msra.mxu0 %v76
    %441 = vmatprep.subr.mxu0 %v69
    %442 = vmatpush1.msra.mxu0 %v68
    %443 = vmatprep.subr.mxu0 %v61
    %444 = vmatpush1.msra.mxu0 %v60
    %445 = vmatprep.subr.mxu0 %v53
    %446 = vmatpush1.msra.mxu0 %v52
    %447 = vmatprep.subr.mxu0 0.0
    %448 = vmatpush2.msra.mxu0 0.0
    %449 = vmatprep.subr.mxu0 0.0
    %450 = vmatpush2.msra.mxu0 0.0
    %451 = vmatprep.subr.mxu0 0.0
    %452 = vmatpush2.msra.mxu0 0.0
    %453 = vmatprep.subr.mxu0 0.0
    %454 = vmatpush2.msra.mxu0 0.0
    %455 = vmatprep.subr.mxu0 0.0
    %456 = vmatpush2.msra.mxu0 0.0
    %457 = vmatprep.subr.mxu0 0.0
    %458 = vmatpush2.msra.mxu0 0.0
    %459 = vmatprep.subr.mxu0 0.0
    %460 = vmatpush2.msra.mxu0 0.0
    %461 = vmatprep.subr.mxu0 0.0
    %462 = vmatpush2.msra.mxu0 0.0
    %463 = vmatprep.subr.mxu0 0.0
    %464 = vmatpush2.msra.mxu0 0.0
    %465 = vmatprep.subr.mxu0 0.0
    %466 = vmatpush2.msra.mxu0 0.0
    %467 = vmatprep.subr.mxu0 0.0
    %468 = vmatpush2.msra.mxu0 0.0
    %469 = vmatprep.subr.mxu0 0.0
    %470 = vmatpush2.msra.mxu0 0.0
    %471 = vmatprep.subr.mxu0 0.0
    %472 = vmatpush2.msra.mxu0 0.0
    %473 = vmatprep.subr.mxu0 0.0
    %474 = vmatpush2.msra.mxu0 0.0
    %475 = vmatprep.subr.mxu0 0.0
    %476 = vmatpush2.msra.mxu0 0.0
    %477 = vmatprep.subr.mxu0 0.0
    %478 = vmatpush2.msra.mxu0 0.0
    %479 = vmatprep.mubr.f32.mxu0 0.0
    %480 = vmatmul.mubr.f32.gmra.mxu0 %v413
    %v481 = vpop.f32.mrf.mxu0
    %v482 = vadd.f32 %v195, %v481
    %v483 = vpop.f32.mrf.mxu0
    %v484 = vadd.f32 %v197, %v483
    %485 = vdwg.mxu0
    %486 = vmatprep.subr.mxu0 0.0
    %487 = vmatpush1.msra.mxu0 0.0
    %488 = vmatprep.subr.mxu0 0.0
    %489 = vmatpush1.msra.mxu0 0.0
    %490 = vmatprep.subr.mxu0 0.0
    %491 = vmatpush1.msra.mxu0 0.0
    %492 = vmatprep.subr.mxu0 0.0
    %493 = vmatpush1.msra.mxu0 0.0
    %494 = vmatprep.subr.mxu0 0.0
    %495 = vmatpush1.msra.mxu0 0.0
    %496 = vmatprep.subr.mxu0 0.0
    %497 = vmatpush1.msra.mxu0 0.0
    %498 = vmatprep.subr.mxu0 0.0
    %499 = vmatpush1.msra.mxu0 0.0
    %500 = vmatprep.subr.mxu0 0.0
    %501 = vmatpush1.msra.mxu0 0.0
    %502 = vmatprep.subr.mxu0 %v111
    %503 = vmatpush1.msra.mxu0 %v110
    %504 = vmatprep.subr.mxu0 %v103
    %505 = vmatpush1.msra.mxu0 %v102
    %506 = vmatprep.subr.mxu0 %v95
    %507 = vmatpush1.msra.mxu0 %v94
    %508 = vmatprep.subr.mxu0 %v87
    %509 = vmatpush1.msra.mxu0 %v86
    %510 = vmatprep.subr.mxu0 %v79
    %511 = vmatpush1.msra.mxu0 %v78
    %512 = vmatprep.subr.mxu0 %v71
    %513 = vmatpush1.msra.mxu0 %v70
    %514 = vmatprep.subr.mxu0 %v63
    %515 = vmatpush1.msra.mxu0 %v62
    %516 = vmatprep.subr.mxu0 %v55
    %517 = vmatpush1.msra.mxu0 %v54
    %518 = vmatprep.subr.mxu0 0.0
    %519 = vmatpush2.msra.mxu0 0.0
    %520 = vmatprep.subr.mxu0 0.0
    %521 = vmatpush2.msra.mxu0 0.0
    %522 = vmatprep.subr.mxu0 0.0
    %523 = vmatpush2.msra.mxu0 0.0
    %524 = vmatprep.subr.mxu0 0.0
    %525 = vmatpush2.msra.mxu0 0.0
    %526 = vmatprep.subr.mxu0 0.0
    %527 = vmatpush2.msra.mxu0 0.0
    %528 = vmatprep.subr.mxu0 0.0
    %529 = vmatpush2.msra.mxu0 0.0
    %530 = vmatprep.subr.mxu0 0.0
    %531 = vmatpush2.msra.mxu0 0.0
    %532 = vmatprep.subr.mxu0 0.0
    %533 = vmatpush2.msra.mxu0 0.0
    %534 = vmatprep.subr.mxu0 0.0
    %535 = vmatpush2.msra.mxu0 0.0
    %536 = vmatprep.subr.mxu0 0.0
    %537 = vmatpush2.msra.mxu0 0.0
    %538 = vmatprep.subr.mxu0 0.0
    %539 = vmatpush2.msra.mxu0 0.0
    %540 = vmatprep.subr.mxu0 0.0
    %541 = vmatpush2.msra.mxu0 0.0
    %542 = vmatprep.subr.mxu0 0.0
    %543 = vmatpush2.msra.mxu0 0.0
    %544 = vmatprep.subr.mxu0 0.0
    %545 = vmatpush2.msra.mxu0 0.0
    %546 = vmatprep.subr.mxu0 0.0
    %547 = vmatpush2.msra.mxu0 0.0
    %548 = vmatprep.subr.mxu0 0.0
    %549 = vmatpush2.msra.mxu0 0.0
    %550 = vmatprep.mubr.f32.mxu0 0.0
    %551 = vmatmul.mubr.f32.gmra.mxu0 %v413
    %v552 = vpop.f32.mrf.mxu0
    %v553 = vadd.f32 %v266, %v552
    %v554 = vpop.f32.mrf.mxu0
    %v555 = vadd.f32 %v268, %v554
    %556 = vdwg.mxu0
    %557 = vmatprep.subr.mxu0 0.0
    %558 = vmatpush1.msra.mxu0 0.0
    %559 = vmatprep.subr.mxu0 0.0
    %560 = vmatpush1.msra.mxu0 0.0
    %561 = vmatprep.subr.mxu0 0.0
    %562 = vmatpush1.msra.mxu0 0.0
    %563 = vmatprep.subr.mxu0 0.0
    %564 = vmatpush1.msra.mxu0 0.0
    %565 = vmatprep.subr.mxu0 0.0
    %566 = vmatpush1.msra.mxu0 0.0
    %567 = vmatprep.subr.mxu0 0.0
    %568 = vmatpush1.msra.mxu0 0.0
    %569 = vmatprep.subr.mxu0 0.0
    %570 = vmatpush1.msra.mxu0 0.0
    %571 = vmatprep.subr.mxu0 0.0
    %572 = vmatpush1.msra.mxu0 0.0
    %573 = vmatprep.subr.mxu0 %v113
    %574 = vmatpush1.msra.mxu0 %v112
    %575 = vmatprep.subr.mxu0 %v105
    %576 = vmatpush1.msra.mxu0 %v104
    %577 = vmatprep.subr.mxu0 %v97
    %578 = vmatpush1.msra.mxu0 %v96
    %579 = vmatprep.subr.mxu0 %v89
    %580 = vmatpush1.msra.mxu0 %v88
    %581 = vmatprep.subr.mxu0 %v81
    %582 = vmatpush1.msra.mxu0 %v80
    %583 = vmatprep.subr.mxu0 %v73
    %584 = vmatpush1.msra.mxu0 %v72
    %585 = vmatprep.subr.mxu0 %v65
    %586 = vmatpush1.msra.mxu0 %v64
    %587 = vmatprep.subr.mxu0 %v57
    %588 = vmatpush1.msra.mxu0 %v56
    %589 = vmatprep.subr.mxu0 0.0
    %590 = vmatpush2.msra.mxu0 0.0
    %591 = vmatprep.subr.mxu0 0.0
    %592 = vmatpush2.msra.mxu0 0.0
    %593 = vmatprep.subr.mxu0 0.0
    %594 = vmatpush2.msra.mxu0 0.0
    %595 = vmatprep.subr.mxu0 0.0
    %596 = vmatpush2.msra.mxu0 0.0
    %597 = vmatprep.subr.mxu0 0.0
    %598 = vmatpush2.msra.mxu0 0.0
    %599 = vmatprep.subr.mxu0 0.0
    %600 = vmatpush2.msra.mxu0 0.0
    %601 = vmatprep.subr.mxu0 0.0
    %602 = vmatpush2.msra.mxu0 0.0
    %603 = vmatprep.subr.mxu0 0.0
    %604 = vmatpush2.msra.mxu0 0.0
    %605 = vmatprep.subr.mxu0 0.0
    %606 = vmatpush2.msra.mxu0 0.0
    %607 = vmatprep.subr.mxu0 0.0
    %608 = vmatpush2.msra.mxu0 0.0
    %609 = vmatprep.subr.mxu0 0.0
    %610 = vmatpush2.msra.mxu0 0.0
    %611 = vmatprep.subr.mxu0 0.0
    %612 = vmatpush2.msra.mxu0 0.0
    %613 = vmatprep.subr.mxu0 0.0
    %614 = vmatpush2.msra.mxu0 0.0
    %615 = vmatprep.subr.mxu0 0.0
    %616 = vmatpush2.msra.mxu0 0.0
    %617 = vmatprep.subr.mxu0 0.0
    %618 = vmatpush2.msra.mxu0 0.0
    %619 = vmatprep.subr.mxu0 0.0
    %620 = vmatpush2.msra.mxu0 0.0
    %621 = vmatprep.mubr.f32.mxu0 0.0
    %622 = vmatmul.mubr.f32.gmra.mxu0 %v413
    %v623 = vpop.f32.mrf.mxu0
    %v624 = vadd.f32 %v337, %v623
    %v625 = vpop.f32.mrf.mxu0
    %v626 = vadd.f32 %v339, %v625
    %627 = vdwg.mxu0
    %628 = vmatprep.subr.mxu0 0.0
    %629 = vmatpush1.msra.mxu0 0.0
    %630 = vmatprep.subr.mxu0 0.0
    %631 = vmatpush1.msra.mxu0 0.0
    %632 = vmatprep.subr.mxu0 0.0
    %633 = vmatpush1.msra.mxu0 0.0
    %634 = vmatprep.subr.mxu0 0.0
    %635 = vmatpush1.msra.mxu0 0.0
    %636 = vmatprep.subr.mxu0 0.0
    %637 = vmatpush1.msra.mxu0 0.0
    %638 = vmatprep.subr.mxu0 0.0
    %639 = vmatpush1.msra.mxu0 0.0
    %640 = vmatprep.subr.mxu0 0.0
    %641 = vmatpush1.msra.mxu0 0.0
    %642 = vmatprep.subr.mxu0 0.0
    %643 = vmatpush1.msra.mxu0 0.0
    %644 = vmatprep.subr.mxu0 %v115
    %645 = vmatpush1.msra.mxu0 %v114
    %646 = vmatprep.subr.mxu0 %v107
    %647 = vmatpush1.msra.mxu0 %v106
    %648 = vmatprep.subr.mxu0 %v99
    %649 = vmatpush1.msra.mxu0 %v98
    %650 = vmatprep.subr.mxu0 %v91
    %651 = vmatpush1.msra.mxu0 %v90
    %652 = vmatprep.subr.mxu0 %v83
    %653 = vmatpush1.msra.mxu0 %v82
    %654 = vmatprep.subr.mxu0 %v75
    %655 = vmatpush1.msra.mxu0 %v74
    %656 = vmatprep.subr.mxu0 %v67
    %657 = vmatpush1.msra.mxu0 %v66
    %658 = vmatprep.subr.mxu0 %v59
    %659 = vmatpush1.msra.mxu0 %v58
    %660 = vmatprep.subr.mxu0 0.0
    %661 = vmatpush2.msra.mxu0 0.0
    %662 = vmatprep.subr.mxu0 0.0
    %663 = vmatpush2.msra.mxu0 0.0
    %664 = vmatprep.subr.mxu0 0.0
    %665 = vmatpush2.msra.mxu0 0.0
    %666 = vmatprep.subr.mxu0 0.0
    %667 = vmatpush2.msra.mxu0 0.0
    %668 = vmatprep.subr.mxu0 0.0
    %669 = vmatpush2.msra.mxu0 0.0
    %670 = vmatprep.subr.mxu0 0.0
    %671 = vmatpush2.msra.mxu0 0.0
    %672 = vmatprep.subr.mxu0 0.0
    %673 = vmatpush2.msra.mxu0 0.0
    %674 = vmatprep.subr.mxu0 0.0
    %675 = vmatpush2.msra.mxu0 0.0
    %676 = vmatprep.subr.mxu0 0.0
    %677 = vmatpush2.msra.mxu0 0.0
    %678 = vmatprep.subr.mxu0 0.0
    %679 = vmatpush2.msra.mxu0 0.0
    %680 = vmatprep.subr.mxu0 0.0
    %681 = vmatpush2.msra.mxu0 0.0
    %682 = vmatprep.subr.mxu0 0.0
    %683 = vmatpush2.msra.mxu0 0.0
    %684 = vmatprep.subr.mxu0 0.0
    %685 = vmatpush2.msra.mxu0 0.0
    %686 = vmatprep.subr.mxu0 0.0
    %687 = vmatpush2.msra.mxu0 0.0
    %688 = vmatprep.subr.mxu0 0.0
    %689 = vmatpush2.msra.mxu0 0.0
    %690 = vmatprep.subr.mxu0 0.0
    %691 = vmatpush2.msra.mxu0 0.0
    %692 = vmatprep.mubr.f32.mxu0 0.0
    %693 = vmatmul.mubr.f32.gmra.mxu0 %v413
    %v694 = vpop.f32.mrf.mxu0
    %v695 = vadd.f32 %v408, %v694
    %v696 = vpop.f32.mrf.mxu0
    %v697 = vadd.f32 %v410, %v696
    %698 = vdwg.mxu0
    %v700 = vsel %vm124, %v123, 0
    %702 = vmatprep.subr.mxu0 0.0
    %703 = vmatpush1.msra.mxu0 0.0
    %704 = vmatprep.subr.mxu0 0.0
    %705 = vmatpush1.msra.mxu0 0.0
    %706 = vmatprep.subr.mxu0 0.0
    %707 = vmatpush1.msra.mxu0 0.0
    %708 = vmatprep.subr.mxu0 0.0
    %709 = vmatpush1.msra.mxu0 0.0
    %710 = vmatprep.subr.mxu0 0.0
    %711 = vmatpush1.msra.mxu0 0.0
    %712 = vmatprep.subr.mxu0 0.0
    %713 = vmatpush1.msra.mxu0 0.0
    %714 = vmatprep.subr.mxu0 0.0
    %715 = vmatpush1.msra.mxu0 0.0
    %716 = vmatprep.subr.mxu0 0.0
    %717 = vmatpush1.msra.mxu0 0.0
    %718 = vmatprep.subr.mxu0 %v109
    %719 = vmatpush1.msra.mxu0 %v108
    %720 = vmatprep.subr.mxu0 %v101
    %721 = vmatpush1.msra.mxu0 %v100
    %722 = vmatprep.subr.mxu0 %v93
    %723 = vmatpush1.msra.mxu0 %v92
    %724 = vmatprep.subr.mxu0 %v85
    %725 = vmatpush1.msra.mxu0 %v84
    %726 = vmatprep.subr.mxu0 %v77
    %727 = vmatpush1.msra.mxu0 %v76
    %728 = vmatprep.subr.mxu0 %v69
    %729 = vmatpush1.msra.mxu0 %v68
    %730 = vmatprep.subr.mxu0 %v61
    %731 = vmatpush1.msra.mxu0 %v60
    %732 = vmatprep.subr.mxu0 %v53
    %733 = vmatpush1.msra.mxu0 %v52
    %734 = vmatprep.subr.mxu0 0.0
    %735 = vmatpush2.msra.mxu0 0.0
    %736 = vmatprep.subr.mxu0 0.0
    %737 = vmatpush2.msra.mxu0 0.0
    %738 = vmatprep.subr.mxu0 0.0
    %739 = vmatpush2.msra.mxu0 0.0
    %740 = vmatprep.subr.mxu0 0.0
    %741 = vmatpush2.msra.mxu0 0.0
    %742 = vmatprep.subr.mxu0 0.0
    %743 = vmatpush2.msra.mxu0 0.0
    %744 = vmatprep.subr.mxu0 0.0
    %745 = vmatpush2.msra.mxu0 0.0
    %746 = vmatprep.subr.mxu0 0.0
    %747 = vmatpush2.msra.mxu0 0.0
    %748 = vmatprep.subr.mxu0 0.0
    %749 = vmatpush2.msra.mxu0 0.0
    %750 = vmatprep.subr.mxu0 0.0
    %751 = vmatpush2.msra.mxu0 0.0
    %752 = vmatprep.subr.mxu0 0.0
    %753 = vmatpush2.msra.mxu0 0.0
    %754 = vmatprep.subr.mxu0 0.0
    %755 = vmatpush2.msra.mxu0 0.0
    %756 = vmatprep.subr.mxu0 0.0
    %757 = vmatpush2.msra.mxu0 0.0
    %758 = vmatprep.subr.mxu0 0.0
    %759 = vmatpush2.msra.mxu0 0.0
    %760 = vmatprep.subr.mxu0 0.0
    %761 = vmatpush2.msra.mxu0 0.0
    %762 = vmatprep.subr.mxu0 0.0
    %763 = vmatpush2.msra.mxu0 0.0
    %764 = vmatprep.subr.mxu0 0.0
    %765 = vmatpush2.msra.mxu0 0.0
    %766 = vmatprep.mubr.f32.mxu0 0.0
    %767 = vmatmul.mubr.f32.gmra.mxu0 %v700
    %v768 = vpop.f32.mrf.mxu0
    %v769 = vadd.f32 0.0, %v768
    %v770 = vpop.f32.mrf.mxu0
    %v771 = vadd.f32 0.0, %v770
    %772 = vdwg.mxu0
    %773 = vmatprep.subr.mxu0 0.0
    %774 = vmatpush1.msra.mxu0 0.0
    %775 = vmatprep.subr.mxu0 0.0
    %776 = vmatpush1.msra.mxu0 0.0
    %777 = vmatprep.subr.mxu0 0.0
    %778 = vmatpush1.msra.mxu0 0.0
    %779 = vmatprep.subr.mxu0 0.0
    %780 = vmatpush1.msra.mxu0 0.0
    %781 = vmatprep.subr.mxu0 0.0
    %782 = vmatpush1.msra.mxu0 0.0
    %783 = vmatprep.subr.mxu0 0.0
    %784 = vmatpush1.msra.mxu0 0.0
    %785 = vmatprep.subr.mxu0 0.0
    %786 = vmatpush1.msra.mxu0 0.0
    %787 = vmatprep.subr.mxu0 0.0
    %788 = vmatpush1.msra.mxu0 0.0
    %789 = vmatprep.subr.mxu0 %v111
    %790 = vmatpush1.msra.mxu0 %v110
    %791 = vmatprep.subr.mxu0 %v103
    %792 = vmatpush1.msra.mxu0 %v102
    %793 = vmatprep.subr.mxu0 %v95
    %794 = vmatpush1.msra.mxu0 %v94
    %795 = vmatprep.subr.mxu0 %v87
    %796 = vmatpush1.msra.mxu0 %v86
    %797 = vmatprep.subr.mxu0 %v79
    %798 = vmatpush1.msra.mxu0 %v78
    %799 = vmatprep.subr.mxu0 %v71
    %800 = vmatpush1.msra.mxu0 %v70
    %801 = vmatprep.subr.mxu0 %v63
    %802 = vmatpush1.msra.mxu0 %v62
    %803 = vmatprep.subr.mxu0 %v55
    %804 = vmatpush1.msra.mxu0 %v54
    %805 = vmatprep.subr.mxu0 0.0
    %806 = vmatpush2.msra.mxu0 0.0
    %807 = vmatprep.subr.mxu0 0.0
    %808 = vmatpush2.msra.mxu0 0.0
    %809 = vmatprep.subr.mxu0 0.0
    %810 = vmatpush2.msra.mxu0 0.0
    %811 = vmatprep.subr.mxu0 0.0
    %812 = vmatpush2.msra.mxu0 0.0
    %813 = vmatprep.subr.mxu0 0.0
    %814 = vmatpush2.msra.mxu0 0.0
    %815 = vmatprep.subr.mxu0 0.0
    %816 = vmatpush2.msra.mxu0 0.0
    %817 = vmatprep.subr.mxu0 0.0
    %818 = vmatpush2.msra.mxu0 0.0
    %819 = vmatprep.subr.mxu0 0.0
    %820 = vmatpush2.msra.mxu0 0.0
    %821 = vmatprep.subr.mxu0 0.0
    %822 = vmatpush2.msra.mxu0 0.0
    %823 = vmatprep.subr.mxu0 0.0
    %824 = vmatpush2.msra.mxu0 0.0
    %825 = vmatprep.subr.mxu0 0.0
    %826 = vmatpush2.msra.mxu0 0.0
    %827 = vmatprep.subr.mxu0 0.0
    %828 = vmatpush2.msra.mxu0 0.0
    %829 = vmatprep.subr.mxu0 0.0
    %830 = vmatpush2.msra.mxu0 0.0
    %831 = vmatprep.subr.mxu0 0.0
    %832 = vmatpush2.msra.mxu0 0.0
    %833 = vmatprep.subr.mxu0 0.0
    %834 = vmatpush2.msra.mxu0 0.0
    %835 = vmatprep.subr.mxu0 0.0
    %836 = vmatpush2.msra.mxu0 0.0
    %837 = vmatprep.mubr.f32.mxu0 0.0
    %838 = vmatmul.mubr.f32.gmra.mxu0 %v700
    %v839 = vpop.f32.mrf.mxu0
    %v840 = vadd.f32 0.0, %v839
    %v841 = vpop.f32.mrf.mxu0
    %v842 = vadd.f32 0.0, %v841
    %843 = vdwg.mxu0
    %844 = vmatprep.subr.mxu0 0.0
    %845 = vmatpush1.msra.mxu0 0.0
    %846 = vmatprep.subr.mxu0 0.0
    %847 = vmatpush1.msra.mxu0 0.0
    %848 = vmatprep.subr.mxu0 0.0
    %849 = vmatpush1.msra.mxu0 0.0
    %850 = vmatprep.subr.mxu0 0.0
    %851 = vmatpush1.msra.mxu0 0.0
    %852 = vmatprep.subr.mxu0 0.0
    %853 = vmatpush1.msra.mxu0 0.0
    %854 = vmatprep.subr.mxu0 0.0
    %855 = vmatpush1.msra.mxu0 0.0
    %856 = vmatprep.subr.mxu0 0.0
    %857 = vmatpush1.msra.mxu0 0.0
    %858 = vmatprep.subr.mxu0 0.0
    %859 = vmatpush1.msra.mxu0 0.0
    %860 = vmatprep.subr.mxu0 %v113
    %861 = vmatpush1.msra.mxu0 %v112
    %862 = vmatprep.subr.mxu0 %v105
    %863 = vmatpush1.msra.mxu0 %v104
    %864 = vmatprep.subr.mxu0 %v97
    %865 = vmatpush1.msra.mxu0 %v96
    %866 = vmatprep.subr.mxu0 %v89
    %867 = vmatpush1.msra.mxu0 %v88
    %868 = vmatprep.subr.mxu0 %v81
    %869 = vmatpush1.msra.mxu0 %v80
    %870 = vmatprep.subr.mxu0 %v73
    %871 = vmatpush1.msra.mxu0 %v72
    %872 = vmatprep.subr.mxu0 %v65
    %873 = vmatpush1.msra.mxu0 %v64
    %874 = vmatprep.subr.mxu0 %v57
    %875 = vmatpush1.msra.mxu0 %v56
    %876 = vmatprep.subr.mxu0 0.0
    %877 = vmatpush2.msra.mxu0 0.0
    %878 = vmatprep.subr.mxu0 0.0
    %879 = vmatpush2.msra.mxu0 0.0
    %880 = vmatprep.subr.mxu0 0.0
    %881 = vmatpush2.msra.mxu0 0.0
    %882 = vmatprep.subr.mxu0 0.0
    %883 = vmatpush2.msra.mxu0 0.0
    %884 = vmatprep.subr.mxu0 0.0
    %885 = vmatpush2.msra.mxu0 0.0
    %886 = vmatprep.subr.mxu0 0.0
    %887 = vmatpush2.msra.mxu0 0.0
    %888 = vmatprep.subr.mxu0 0.0
    %889 = vmatpush2.msra.mxu0 0.0
    %890 = vmatprep.subr.mxu0 0.0
    %891 = vmatpush2.msra.mxu0 0.0
    %892 = vmatprep.subr.mxu0 0.0
    %893 = vmatpush2.msra.mxu0 0.0
    %894 = vmatprep.subr.mxu0 0.0
    %895 = vmatpush2.msra.mxu0 0.0
    %896 = vmatprep.subr.mxu0 0.0
    %897 = vmatpush2.msra.mxu0 0.0
    %898 = vmatprep.subr.mxu0 0.0
    %899 = vmatpush2.msra.mxu0 0.0
    %900 = vmatprep.subr.mxu0 0.0
    %901 = vmatpush2.msra.mxu0 0.0
    %902 = vmatprep.subr.mxu0 0.0
    %903 = vmatpush2.msra.mxu0 0.0
    %904 = vmatprep.subr.mxu0 0.0
    %905 = vmatpush2.msra.mxu0 0.0
    %906 = vmatprep.subr.mxu0 0.0
    %907 = vmatpush2.msra.mxu0 0.0
    %908 = vmatprep.mubr.f32.mxu0 0.0
    %909 = vmatmul.mubr.f32.gmra.mxu0 %v700
    %v910 = vpop.f32.mrf.mxu0
    %v911 = vadd.f32 0.0, %v910
    %v912 = vpop.f32.mrf.mxu0
    %v913 = vadd.f32 0.0, %v912
    %914 = vdwg.mxu0
    %915 = vmatprep.subr.mxu0 0.0
    %916 = vmatpush1.msra.mxu0 0.0
    %917 = vmatprep.subr.mxu0 0.0
    %918 = vmatpush1.msra.mxu0 0.0
    %919 = vmatprep.subr.mxu0 0.0
    %920 = vmatpush1.msra.mxu0 0.0
    %921 = vmatprep.subr.mxu0 0.0
    %922 = vmatpush1.msra.mxu0 0.0
    %923 = vmatprep.subr.mxu0 0.0
    %924 = vmatpush1.msra.mxu0 0.0
    %925 = vmatprep.subr.mxu0 0.0
    %926 = vmatpush1.msra.mxu0 0.0
    %927 = vmatprep.subr.mxu0 0.0
    %928 = vmatpush1.msra.mxu0 0.0
    %929 = vmatprep.subr.mxu0 0.0
    %930 = vmatpush1.msra.mxu0 0.0
    %931 = vmatprep.subr.mxu0 %v115
    %932 = vmatpush1.msra.mxu0 %v114
    %933 = vmatprep.subr.mxu0 %v107
    %934 = vmatpush1.msra.mxu0 %v106
    %935 = vmatprep.subr.mxu0 %v99
    %936 = vmatpush1.msra.mxu0 %v98
    %937 = vmatprep.subr.mxu0 %v91
    %938 = vmatpush1.msra.mxu0 %v90
    %939 = vmatprep.subr.mxu0 %v83
    %940 = vmatpush1.msra.mxu0 %v82
    %941 = vmatprep.subr.mxu0 %v75
    %942 = vmatpush1.msra.mxu0 %v74
    %943 = vmatprep.subr.mxu0 %v67
    %944 = vmatpush1.msra.mxu0 %v66
    %945 = vmatprep.subr.mxu0 %v59
    %946 = vmatpush1.msra.mxu0 %v58
    %947 = vmatprep.subr.mxu0 0.0
    %948 = vmatpush2.msra.mxu0 0.0
    %949 = vmatprep.subr.mxu0 0.0
    %950 = vmatpush2.msra.mxu0 0.0
    %951 = vmatprep.subr.mxu0 0.0
    %952 = vmatpush2.msra.mxu0 0.0
    %953 = vmatprep.subr.mxu0 0.0
    %954 = vmatpush2.msra.mxu0 0.0
    %955 = vmatprep.subr.mxu0 0.0
    %956 = vmatpush2.msra.mxu0 0.0
    %957 = vmatprep.subr.mxu0 0.0
    %958 = vmatpush2.msra.mxu0 0.0
    %959 = vmatprep.subr.mxu0 0.0
    %960 = vmatpush2.msra.mxu0 0.0
    %961 = vmatprep.subr.mxu0 0.0
    %962 = vmatpush2.msra.mxu0 0.0
    %963 = vmatprep.subr.mxu0 0.0
    %964 = vmatpush2.msra.mxu0 0.0
    %965 = vmatprep.subr.mxu0 0.0
    %966 = vmatpush2.msra.mxu0 0.0
    %967 = vmatprep.subr.mxu0 0.0
    %968 = vmatpush2.msra.mxu0 0.0
    %969 = vmatprep.subr.mxu0 0.0
    %970 = vmatpush2.msra.mxu0 0.0
    %971 = vmatprep.subr.mxu0 0.0
    %972 = vmatpush2.msra.mxu0 0.0
    %973 = vmatprep.subr.mxu0 0.0
    %974 = vmatpush2.msra.mxu0 0.0
    %975 = vmatprep.subr.mxu0 0.0
    %976 = vmatpush2.msra.mxu0 0.0
    %977 = vmatprep.subr.mxu0 0.0
    %978 = vmatpush2.msra.mxu0 0.0
    %979 = vmatprep.mubr.f32.mxu0 0.0
    %980 = vmatmul.mubr.f32.gmra.mxu0 %v700
    %v981 = vpop.f32.mrf.mxu0
    %v982 = vadd.f32 0.0, %v981
    %v983 = vpop.f32.mrf.mxu0
    %v984 = vadd.f32 0.0, %v983
    %985 = vdwg.mxu0
    %v986 = vadd.f32 %v482, %v769
    %v987 = vadd.f32 %v484, %v771
    %v988 = vadd.f32 %v553, %v840
    %v989 = vadd.f32 %v555, %v842
    %v990 = vadd.f32 %v624, %v911
    %v991 = vadd.f32 %v626, %v913
    %v992 = vadd.f32 %v695, %v982
    %v993 = vadd.f32 %v697, %v984
    %v995 = vlaneseq
    %v996 = vshrl.u32 %v995, 7
    %v997 = vsub.s32 0, %v996
    %v998 = vrot.slane %v116, %v997
    %v999 = vlaneseq
    %v1000 = vshrl.u32 %v999, 7
    %v1001 = vsub.s32 1, %v1000
    %v1002 = vrot.slane %v116, %v1001
    %v1003 = vlaneseq
    %v1004 = vshrl.u32 %v1003, 7
    %v1005 = vsub.s32 2, %v1004
    %v1006 = vrot.slane %v116, %v1005
    %v1007 = vlaneseq
    %v1008 = vshrl.u32 %v1007, 7
    %v1009 = vsub.s32 3, %v1008
    %v1010 = vrot.slane %v116, %v1009
    %v1011 = vlaneseq
    %v1012 = vshrl.u32 %v1011, 7
    %v1013 = vsub.s32 4, %v1012
    %v1014 = vrot.slane %v116, %v1013
    %v1015 = vlaneseq
    %v1016 = vshrl.u32 %v1015, 7
    %v1017 = vsub.s32 5, %v1016
    %v1018 = vrot.slane %v116, %v1017
    %v1019 = vlaneseq
    %v1020 = vshrl.u32 %v1019, 7
    %v1021 = vsub.s32 6, %v1020
    %v1022 = vrot.slane %v116, %v1021
    %v1023 = vlaneseq
    %v1024 = vshrl.u32 %v1023, 7
    %v1025 = vsub.s32 7, %v1024
    %v1026 = vrot.slane %v116, %v1025
    %v1035 = vadd.f32 %v986, %v998
    %v1036 = vadd.f32 %v987, %v1002
    %v1037 = vadd.f32 %v988, %v1006
    %v1038 = vadd.f32 %v989, %v1010
    %v1039 = vadd.f32 %v990, %v1014
    %v1040 = vadd.f32 %v991, %v1018
    %v1041 = vadd.f32 %v992, %v1022
    %v1042 = vadd.f32 %v993, %v1026
    %v1043 = vand.u32 2147483647, %v1035
    %vm1044 = vcmp.le.f32.partialorder %v1043, 0.7853982
    %vm1045 = vcmp.lt.s32.totalorder %v1035, 0
    %v1046 = vand.u32 %v1035, 2139095040
    %v1047 = vshrl.u32 %v1046, 23
    %v1048 = vsub.s32 %v1047, 127
    %v1049 = vand.u32 2147483647, %v1035
    %v1050 = vand.u32 %v1049, 8388607
    %v1051 = vor.u32 %v1050, 8388608
    %v1052 = vsub.s32 0, %v1051
    %v1053 = vadd.s32 %v1048, 1
    %vm1054 = vcmp.gt.s32.totalorder %v1053, 0
    %v1055 = vsel %vm1054, %v1053, 0
    %v1056 = vshrl.u32 %v1055, 5
    %v1057 = vand.u32 %v1055, 31
    %v1058 = vsub.s32 32, %v1057
    %v1059 = vshrl.u32 683565275, %v1058
    %v1060 = vshll.u32 683565275, %v1057
    %v1061 = vshrl.u32 2475754826, %v1058
    %v1062 = vor.u32 %v1060, %v1061
    %v1063 = vshll.u32 2475754826, %v1057
    %v1064 = vshrl.u32 2131351028, %v1058
    %v1065 = vor.u32 %v1063, %v1064
    %v1066 = vshll.u32 2131351028, %v1057
    %v1067 = vshrl.u32 2102212464, %v1058
    %v1068 = vor.u32 %v1066, %v1067
    %v1069 = vshll.u32 2102212464, %v1057
    %v1070 = vshrl.u32 920167782, %v1058
    %v1071 = vor.u32 %v1069, %v1070
    %v1072 = vshll.u32 920167782, %v1057
    %v1073 = vshrl.u32 1326507024, %v1058
    %v1074 = vor.u32 %v1072, %v1073
    %vm1075 = vcmp.lt.s32.totalorder %v1056, 1
    %vm1076 = vcmp.lt.s32.totalorder %v1056, 2
    %vm1077 = vcmp.lt.s32.totalorder %v1056, 3
    %vm1078 = vcmp.lt.s32.totalorder %v1056, 4
    %v1079 = vsel %vm1075, %v1059, %v1062
    %v1080 = vsel %vm1078, %v1068, 2102212464
    %v1081 = vsel %vm1077, %v1065, %v1080
    %v1082 = vsel %vm1076, %v1079, %v1081
    %v1083 = vsel %vm1075, %v1062, %v1065
    %v1084 = vsel %vm1078, %v1071, 920167782
    %v1085 = vsel %vm1077, %v1068, %v1084
    %v1086 = vsel %vm1076, %v1083, %v1085
    %v1087 = vsel %vm1075, %v1065, %v1068
    %v1088 = vsel %vm1078, %v1074, 1326507024
    %v1089 = vsel %vm1077, %v1071, %v1088
    %v1090 = vsel %vm1076, %v1087, %v1089
    %v1091 = vshll.u32 %v1051, 8
    %v1092 = vmul.u32.u64.compose %v1091, %v1090
    %v1093 = vextract.low.u32 %v1092
    %v1094 = vextract.high.u32 %v1092
    %v1095 = vmul.u32.u64.compose %v1091, %v1086
    %v1096 = vextract.low.u32 %v1095
    %v1097 = vextract.high.u32 %v1095
    %v1098 = vmul.u32 %v1091, %v1082
    %v1099 = vadd.s32 %v1094, %v1096
    %vm1100 = vc.u32 %v1094, %v1096
    %v1101 = vadd.s32 %v1097, 1
    %v1102 = vsel %vm1100, %v1101, %v1097
    %v1103 = vadd.s32 %v1098, %v1102
    %v1104 = vadd.s32 %v1103, 536870912
    %v1105 = vshrl.u32 %v1104, 30
    %v1106 = vshll.u32 %v1105, 30
    %v1107 = vsub.s32 %v1103, %v1106
    %vm1108 = vcmp.lt.s32.totalorder %v1107, 0
    %v1109 = vsub.s32 0, %v1107
    %v1110 = vsel %vm1108, %v1109, %v1107
    %v1111 = vclz %v1110
    %v1112 = vsub.s32 %v1111, 2
    %vm1113 = vcmp.gt.s32.totalorder 0, %v1112
    %v1114 = vsel %vm1113, 0, %v1112
    %v1115 = vsub.s32 32, %v1114
    %v1116 = vshll.u32 %v1107, %v1114
    %v1117 = vshrl.u32 %v1099, %v1115
    %v1118 = vor.u32 %v1116, %v1117
    %v1119 = vsub.s32 4294967266, %v1114
    %v1120 = vadd.s32 %v1119, 127
    %v1121 = vshll.u32 %v1120, 23
    %v1122 = vor.u32 4788187, %v1121
    %v1123 = vand.u32 2147483647, %v1122
    %v1125 = vcvt.s32.f32 %v1118
    %v1126 = vmul.f32 %v1125, %v1123
    %v1127 = vxor.u32 %v1126, 2147483648
    %v1128 = vsel %vm1045, %v1127, %v1126
    %v1129 = vsub.s32 4, %v1105
    %v1130 = vsel %vm1045, %v1129, %v1105
    %v1131 = vsel %vm1044, %v1035, %v1128
    %v1132 = vsel %vm1044, 0, %v1130
    %v1133 = vcosq.f32.pop %v1131
    %v1134 = vsinq.f32.pop %v1131
    %vm1135 = vweird.f32 %v1035
    %v1136 = vadd.s32 %v1132, 3
    %v1137 = vand.u32 %v1136, 3
    %vm1138 = vcmp.lt.s32.totalorder %v1137, 2
    %vm1139 = vcmp.eq.s32.totalorder %v1137, 0
    %v1140 = vxor.u32 %v1134, 2147483648
    %v1141 = vsel %vm1139, %v1133, %v1140
    %vm1142 = vcmp.eq.s32.totalorder %v1137, 2
    %v1143 = vxor.u32 %v1133, 2147483648
    %v1144 = vsel %vm1142, %v1143, %v1134
    %v1145 = vsel %vm1138, %v1141, %v1144
    %v1146 = vsel %vm1135, nan, %v1145
    %v1147 = vand.u32 2147483647, %v1036
    %vm1148 = vcmp.le.f32.partialorder %v1147, 0.7853982
    %vm1149 = vcmp.lt.s32.totalorder %v1036, 0
    %v1150 = vand.u32 %v1036, 2139095040
    %v1151 = vshrl.u32 %v1150, 23
    %v1152 = vsub.s32 %v1151, 127
    %v1153 = vand.u32 2147483647, %v1036
    %v1154 = vand.u32 %v1153, 8388607
    %v1155 = vor.u32 %v1154, 8388608
    %v1156 = vsub.s32 0, %v1155
    %v1157 = vadd.s32 %v1152, 1
    %vm1158 = vcmp.gt.s32.totalorder %v1157, 0
    %v1159 = vsel %vm1158, %v1157, 0
    %v1160 = vshrl.u32 %v1159, 5
    %v1161 = vand.u32 %v1159, 31
    %v1162 = vsub.s32 32, %v1161
    %v1163 = vshrl.u32 683565275, %v1162
    %v1164 = vshll.u32 683565275, %v1161
    %v1165 = vshrl.u32 2475754826, %v1162
    %v1166 = vor.u32 %v1164, %v1165
    %v1167 = vshll.u32 2475754826, %v1161
    %v1168 = vshrl.u32 2131351028, %v1162
    %v1169 = vor.u32 %v1167, %v1168
    %v1170 = vshll.u32 2131351028, %v1161
    %v1171 = vshrl.u32 2102212464, %v1162
    %v1172 = vor.u32 %v1170, %v1171
    %v1173 = vshll.u32 2102212464, %v1161
    %v1174 = vshrl.u32 920167782, %v1162
    %v1175 = vor.u32 %v1173, %v1174
    %v1176 = vshll.u32 920167782, %v1161
    %v1177 = vshrl.u32 1326507024, %v1162
    %v1178 = vor.u32 %v1176, %v1177
    %vm1179 = vcmp.lt.s32.totalorder %v1160, 1
    %vm1180 = vcmp.lt.s32.totalorder %v1160, 2
    %vm1181 = vcmp.lt.s32.totalorder %v1160, 3
    %vm1182 = vcmp.lt.s32.totalorder %v1160, 4
    %v1183 = vsel %vm1179, %v1163, %v1166
    %v1184 = vsel %vm1182, %v1172, 2102212464
    %v1185 = vsel %vm1181, %v1169, %v1184
    %v1186 = vsel %vm1180, %v1183, %v1185
    %v1187 = vsel %vm1179, %v1166, %v1169
    %v1188 = vsel %vm1182, %v1175, 920167782
    %v1189 = vsel %vm1181, %v1172, %v1188
    %v1190 = vsel %vm1180, %v1187, %v1189
    %v1191 = vsel %vm1179, %v1169, %v1172
    %v1192 = vsel %vm1182, %v1178, 1326507024
    %v1193 = vsel %vm1181, %v1175, %v1192
    %v1194 = vsel %vm1180, %v1191, %v1193
    %v1195 = vshll.u32 %v1155, 8
    %v1196 = vmul.u32.u64.compose %v1195, %v1194
    %v1197 = vextract.low.u32 %v1196
    %v1198 = vextract.high.u32 %v1196
    %v1199 = vmul.u32.u64.compose %v1195, %v1190
    %v1200 = vextract.low.u32 %v1199
    %v1201 = vextract.high.u32 %v1199
    %v1202 = vmul.u32 %v1195, %v1186
    %v1203 = vadd.s32 %v1198, %v1200
    %vm1204 = vc.u32 %v1198, %v1200
    %v1205 = vadd.s32 %v1201, 1
    %v1206 = vsel %vm1204, %v1205, %v1201
    %v1207 = vadd.s32 %v1202, %v1206
    %v1208 = vadd.s32 %v1207, 536870912
    %v1209 = vshrl.u32 %v1208, 30
    %v1210 = vshll.u32 %v1209, 30
    %v1211 = vsub.s32 %v1207, %v1210
    %vm1212 = vcmp.lt.s32.totalorder %v1211, 0
    %v1213 = vsub.s32 0, %v1211
    %v1214 = vsel %vm1212, %v1213, %v1211
    %v1215 = vclz %v1214
    %v1216 = vsub.s32 %v1215, 2
    %vm1217 = vcmp.gt.s32.totalorder 0, %v1216
    %v1218 = vsel %vm1217, 0, %v1216
    %v1219 = vsub.s32 32, %v1218
    %v1220 = vshll.u32 %v1211, %v1218
    %v1221 = vshrl.u32 %v1203, %v1219
    %v1222 = vor.u32 %v1220, %v1221
    %v1223 = vsub.s32 4294967266, %v1218
    %v1224 = vadd.s32 %v1223, 127
    %v1225 = vshll.u32 %v1224, 23
    %v1226 = vor.u32 4788187, %v1225
    %v1227 = vand.u32 2147483647, %v1226
    %v1229 = vcvt.s32.f32 %v1222
    %v1230 = vmul.f32 %v1229, %v1227
    %v1231 = vxor.u32 %v1230, 2147483648
    %v1232 = vsel %vm1149, %v1231, %v1230
    %v1233 = vsub.s32 4, %v1209
    %v1234 = vsel %vm1149, %v1233, %v1209
    %v1235 = vsel %vm1148, %v1036, %v1232
    %v1236 = vsel %vm1148, 0, %v1234
    %v1237 = vcosq.f32.pop %v1235
    %v1238 = vsinq.f32.pop %v1235
    %vm1239 = vweird.f32 %v1036
    %v1240 = vadd.s32 %v1236, 3
    %v1241 = vand.u32 %v1240, 3
    %vm1242 = vcmp.lt.s32.totalorder %v1241, 2
    %vm1243 = vcmp.eq.s32.totalorder %v1241, 0
    %v1244 = vxor.u32 %v1238, 2147483648
    %v1245 = vsel %vm1243, %v1237, %v1244
    %vm1246 = vcmp.eq.s32.totalorder %v1241, 2
    %v1247 = vxor.u32 %v1237, 2147483648
    %v1248 = vsel %vm1246, %v1247, %v1238
    %v1249 = vsel %vm1242, %v1245, %v1248
    %v1250 = vsel %vm1239, nan, %v1249
    %v1251 = vand.u32 2147483647, %v1037
    %vm1252 = vcmp.le.f32.partialorder %v1251, 0.7853982
    %vm1253 = vcmp.lt.s32.totalorder %v1037, 0
    %v1254 = vand.u32 %v1037, 2139095040
    %v1255 = vshrl.u32 %v1254, 23
    %v1256 = vsub.s32 %v1255, 127
    %v1257 = vand.u32 2147483647, %v1037
    %v1258 = vand.u32 %v1257, 8388607
    %v1259 = vor.u32 %v1258, 8388608
    %v1260 = vsub.s32 0, %v1259
    %v1261 = vadd.s32 %v1256, 1
    %vm1262 = vcmp.gt.s32.totalorder %v1261, 0
    %v1263 = vsel %vm1262, %v1261, 0
    %v1264 = vshrl.u32 %v1263, 5
    %v1265 = vand.u32 %v1263, 31
    %v1266 = vsub.s32 32, %v1265
    %v1267 = vshrl.u32 683565275, %v1266
    %v1268 = vshll.u32 683565275, %v1265
    %v1269 = vshrl.u32 2475754826, %v1266
    %v1270 = vor.u32 %v1268, %v1269
    %v1271 = vshll.u32 2475754826, %v1265
    %v1272 = vshrl.u32 2131351028, %v1266
    %v1273 = vor.u32 %v1271, %v1272
    %v1274 = vshll.u32 2131351028, %v1265
    %v1275 = vshrl.u32 2102212464, %v1266
    %v1276 = vor.u32 %v1274, %v1275
    %v1277 = vshll.u32 2102212464, %v1265
    %v1278 = vshrl.u32 920167782, %v1266
    %v1279 = vor.u32 %v1277, %v1278
    %v1280 = vshll.u32 920167782, %v1265
    %v1281 = vshrl.u32 1326507024, %v1266
    %v1282 = vor.u32 %v1280, %v1281
    %vm1283 = vcmp.lt.s32.totalorder %v1264, 1
    %vm1284 = vcmp.lt.s32.totalorder %v1264, 2
    %vm1285 = vcmp.lt.s32.totalorder %v1264, 3
    %vm1286 = vcmp.lt.s32.totalorder %v1264, 4
    %v1287 = vsel %vm1283, %v1267, %v1270
    %v1288 = vsel %vm1286, %v1276, 2102212464
    %v1289 = vsel %vm1285, %v1273, %v1288
    %v1290 = vsel %vm1284, %v1287, %v1289
    %v1291 = vsel %vm1283, %v1270, %v1273
    %v1292 = vsel %vm1286, %v1279, 920167782
    %v1293 = vsel %vm1285, %v1276, %v1292
    %v1294 = vsel %vm1284, %v1291, %v1293
    %v1295 = vsel %vm1283, %v1273, %v1276
    %v1296 = vsel %vm1286, %v1282, 1326507024
    %v1297 = vsel %vm1285, %v1279, %v1296
    %v1298 = vsel %vm1284, %v1295, %v1297
    %v1299 = vshll.u32 %v1259, 8
    %v1300 = vmul.u32.u64.compose %v1299, %v1298
    %v1301 = vextract.low.u32 %v1300
    %v1302 = vextract.high.u32 %v1300
    %v1303 = vmul.u32.u64.compose %v1299, %v1294
    %v1304 = vextract.low.u32 %v1303
    %v1305 = vextract.high.u32 %v1303
    %v1306 = vmul.u32 %v1299, %v1290
    %v1307 = vadd.s32 %v1302, %v1304
    %vm1308 = vc.u32 %v1302, %v1304
    %v1309 = vadd.s32 %v1305, 1
    %v1310 = vsel %vm1308, %v1309, %v1305
    %v1311 = vadd.s32 %v1306, %v1310
    %v1312 = vadd.s32 %v1311, 536870912
    %v1313 = vshrl.u32 %v1312, 30
    %v1314 = vshll.u32 %v1313, 30
    %v1315 = vsub.s32 %v1311, %v1314
    %vm1316 = vcmp.lt.s32.totalorder %v1315, 0
    %v1317 = vsub.s32 0, %v1315
    %v1318 = vsel %vm1316, %v1317, %v1315
    %v1319 = vclz %v1318
    %v1320 = vsub.s32 %v1319, 2
    %vm1321 = vcmp.gt.s32.totalorder 0, %v1320
    %v1322 = vsel %vm1321, 0, %v1320
    %v1323 = vsub.s32 32, %v1322
    %v1324 = vshll.u32 %v1315, %v1322
    %v1325 = vshrl.u32 %v1307, %v1323
    %v1326 = vor.u32 %v1324, %v1325
    %v1327 = vsub.s32 4294967266, %v1322
    %v1328 = vadd.s32 %v1327, 127
    %v1329 = vshll.u32 %v1328, 23
    %v1330 = vor.u32 4788187, %v1329
    %v1331 = vand.u32 2147483647, %v1330
    %v1333 = vcvt.s32.f32 %v1326
    %v1334 = vmul.f32 %v1333, %v1331
    %v1335 = vxor.u32 %v1334, 2147483648
    %v1336 = vsel %vm1253, %v1335, %v1334
    %v1337 = vsub.s32 4, %v1313
    %v1338 = vsel %vm1253, %v1337, %v1313
    %v1339 = vsel %vm1252, %v1037, %v1336
    %v1340 = vsel %vm1252, 0, %v1338
    %v1341 = vcosq.f32.pop %v1339
    %v1342 = vsinq.f32.pop %v1339
    %vm1343 = vweird.f32 %v1037
    %v1344 = vadd.s32 %v1340, 3
    %v1345 = vand.u32 %v1344, 3
    %vm1346 = vcmp.lt.s32.totalorder %v1345, 2
    %vm1347 = vcmp.eq.s32.totalorder %v1345, 0
    %v1348 = vxor.u32 %v1342, 2147483648
    %v1349 = vsel %vm1347, %v1341, %v1348
    %vm1350 = vcmp.eq.s32.totalorder %v1345, 2
    %v1351 = vxor.u32 %v1341, 2147483648
    %v1352 = vsel %vm1350, %v1351, %v1342
    %v1353 = vsel %vm1346, %v1349, %v1352
    %v1354 = vsel %vm1343, nan, %v1353
    %v1355 = vand.u32 2147483647, %v1038
    %vm1356 = vcmp.le.f32.partialorder %v1355, 0.7853982
    %vm1357 = vcmp.lt.s32.totalorder %v1038, 0
    %v1358 = vand.u32 %v1038, 2139095040
    %v1359 = vshrl.u32 %v1358, 23
    %v1360 = vsub.s32 %v1359, 127
    %v1361 = vand.u32 2147483647, %v1038
    %v1362 = vand.u32 %v1361, 8388607
    %v1363 = vor.u32 %v1362, 8388608
    %v1364 = vsub.s32 0, %v1363
    %v1365 = vadd.s32 %v1360, 1
    %vm1366 = vcmp.gt.s32.totalorder %v1365, 0
    %v1367 = vsel %vm1366, %v1365, 0
    %v1368 = vshrl.u32 %v1367, 5
    %v1369 = vand.u32 %v1367, 31
    %v1370 = vsub.s32 32, %v1369
    %v1371 = vshrl.u32 683565275, %v1370
    %v1372 = vshll.u32 683565275, %v1369
    %v1373 = vshrl.u32 2475754826, %v1370
    %v1374 = vor.u32 %v1372, %v1373
    %v1375 = vshll.u32 2475754826, %v1369
    %v1376 = vshrl.u32 2131351028, %v1370
    %v1377 = vor.u32 %v1375, %v1376
    %v1378 = vshll.u32 2131351028, %v1369
    %v1379 = vshrl.u32 2102212464, %v1370
    %v1380 = vor.u32 %v1378, %v1379
    %v1381 = vshll.u32 2102212464, %v1369
    %v1382 = vshrl.u32 920167782, %v1370
    %v1383 = vor.u32 %v1381, %v1382
    %v1384 = vshll.u32 920167782, %v1369
    %v1385 = vshrl.u32 1326507024, %v1370
    %v1386 = vor.u32 %v1384, %v1385
    %vm1387 = vcmp.lt.s32.totalorder %v1368, 1
    %vm1388 = vcmp.lt.s32.totalorder %v1368, 2
    %vm1389 = vcmp.lt.s32.totalorder %v1368, 3
    %vm1390 = vcmp.lt.s32.totalorder %v1368, 4
    %v1391 = vsel %vm1387, %v1371, %v1374
    %v1392 = vsel %vm1390, %v1380, 2102212464
    %v1393 = vsel %vm1389, %v1377, %v1392
    %v1394 = vsel %vm1388, %v1391, %v1393
    %v1395 = vsel %vm1387, %v1374, %v1377
    %v1396 = vsel %vm1390, %v1383, 920167782
    %v1397 = vsel %vm1389, %v1380, %v1396
    %v1398 = vsel %vm1388, %v1395, %v1397
    %v1399 = vsel %vm1387, %v1377, %v1380
    %v1400 = vsel %vm1390, %v1386, 1326507024
    %v1401 = vsel %vm1389, %v1383, %v1400
    %v1402 = vsel %vm1388, %v1399, %v1401
    %v1403 = vshll.u32 %v1363, 8
    %v1404 = vmul.u32.u64.compose %v1403, %v1402
    %v1405 = vextract.low.u32 %v1404
    %v1406 = vextract.high.u32 %v1404
    %v1407 = vmul.u32.u64.compose %v1403, %v1398
    %v1408 = vextract.low.u32 %v1407
    %v1409 = vextract.high.u32 %v1407
    %v1410 = vmul.u32 %v1403, %v1394
    %v1411 = vadd.s32 %v1406, %v1408
    %vm1412 = vc.u32 %v1406, %v1408
    %v1413 = vadd.s32 %v1409, 1
    %v1414 = vsel %vm1412, %v1413, %v1409
    %v1415 = vadd.s32 %v1410, %v1414
    %v1416 = vadd.s32 %v1415, 536870912
    %v1417 = vshrl.u32 %v1416, 30
    %v1418 = vshll.u32 %v1417, 30
    %v1419 = vsub.s32 %v1415, %v1418
    %vm1420 = vcmp.lt.s32.totalorder %v1419, 0
    %v1421 = vsub.s32 0, %v1419
    %v1422 = vsel %vm1420, %v1421, %v1419
    %v1423 = vclz %v1422
    %v1424 = vsub.s32 %v1423, 2
    %vm1425 = vcmp.gt.s32.totalorder 0, %v1424
    %v1426 = vsel %vm1425, 0, %v1424
    %v1427 = vsub.s32 32, %v1426
    %v1428 = vshll.u32 %v1419, %v1426
    %v1429 = vshrl.u32 %v1411, %v1427
    %v1430 = vor.u32 %v1428, %v1429
    %v1431 = vsub.s32 4294967266, %v1426
    %v1432 = vadd.s32 %v1431, 127
    %v1433 = vshll.u32 %v1432, 23
    %v1434 = vor.u32 4788187, %v1433
    %v1435 = vand.u32 2147483647, %v1434
    %v1437 = vcvt.s32.f32 %v1430
    %v1438 = vmul.f32 %v1437, %v1435
    %v1439 = vxor.u32 %v1438, 2147483648
    %v1440 = vsel %vm1357, %v1439, %v1438
    %v1441 = vsub.s32 4, %v1417
    %v1442 = vsel %vm1357, %v1441, %v1417
    %v1443 = vsel %vm1356, %v1038, %v1440
    %v1444 = vsel %vm1356, 0, %v1442
    %v1445 = vcosq.f32.pop %v1443
    %v1446 = vsinq.f32.pop %v1443
    %vm1447 = vweird.f32 %v1038
    %v1448 = vadd.s32 %v1444, 3
    %v1449 = vand.u32 %v1448, 3
    %vm1450 = vcmp.lt.s32.totalorder %v1449, 2
    %vm1451 = vcmp.eq.s32.totalorder %v1449, 0
    %v1452 = vxor.u32 %v1446, 2147483648
    %v1453 = vsel %vm1451, %v1445, %v1452
    %vm1454 = vcmp.eq.s32.totalorder %v1449, 2
    %v1455 = vxor.u32 %v1445, 2147483648
    %v1456 = vsel %vm1454, %v1455, %v1446
    %v1457 = vsel %vm1450, %v1453, %v1456
    %v1458 = vsel %vm1447, nan, %v1457
    %v1459 = vand.u32 2147483647, %v1039
    %vm1460 = vcmp.le.f32.partialorder %v1459, 0.7853982
    %vm1461 = vcmp.lt.s32.totalorder %v1039, 0
    %v1462 = vand.u32 %v1039, 2139095040
    %v1463 = vshrl.u32 %v1462, 23
    %v1464 = vsub.s32 %v1463, 127
    %v1465 = vand.u32 2147483647, %v1039
    %v1466 = vand.u32 %v1465, 8388607
    %v1467 = vor.u32 %v1466, 8388608
    %v1468 = vsub.s32 0, %v1467
    %v1469 = vadd.s32 %v1464, 1
    %vm1470 = vcmp.gt.s32.totalorder %v1469, 0
    %v1471 = vsel %vm1470, %v1469, 0
    %v1472 = vshrl.u32 %v1471, 5
    %v1473 = vand.u32 %v1471, 31
    %v1474 = vsub.s32 32, %v1473
    %v1475 = vshrl.u32 683565275, %v1474
    %v1476 = vshll.u32 683565275, %v1473
    %v1477 = vshrl.u32 2475754826, %v1474
    %v1478 = vor.u32 %v1476, %v1477
    %v1479 = vshll.u32 2475754826, %v1473
    %v1480 = vshrl.u32 2131351028, %v1474
    %v1481 = vor.u32 %v1479, %v1480
    %v1482 = vshll.u32 2131351028, %v1473
    %v1483 = vshrl.u32 2102212464, %v1474
    %v1484 = vor.u32 %v1482, %v1483
    %v1485 = vshll.u32 2102212464, %v1473
    %v1486 = vshrl.u32 920167782, %v1474
    %v1487 = vor.u32 %v1485, %v1486
    %v1488 = vshll.u32 920167782, %v1473
    %v1489 = vshrl.u32 1326507024, %v1474
    %v1490 = vor.u32 %v1488, %v1489
    %vm1491 = vcmp.lt.s32.totalorder %v1472, 1
    %vm1492 = vcmp.lt.s32.totalorder %v1472, 2
    %vm1493 = vcmp.lt.s32.totalorder %v1472, 3
    %vm1494 = vcmp.lt.s32.totalorder %v1472, 4
    %v1495 = vsel %vm1491, %v1475, %v1478
    %v1496 = vsel %vm1494, %v1484, 2102212464
    %v1497 = vsel %vm1493, %v1481, %v1496
    %v1498 = vsel %vm1492, %v1495, %v1497
    %v1499 = vsel %vm1491, %v1478, %v1481
    %v1500 = vsel %vm1494, %v1487, 920167782
    %v1501 = vsel %vm1493, %v1484, %v1500
    %v1502 = vsel %vm1492, %v1499, %v1501
    %v1503 = vsel %vm1491, %v1481, %v1484
    %v1504 = vsel %vm1494, %v1490, 1326507024
    %v1505 = vsel %vm1493, %v1487, %v1504
    %v1506 = vsel %vm1492, %v1503, %v1505
    %v1507 = vshll.u32 %v1467, 8
    %v1508 = vmul.u32.u64.compose %v1507, %v1506
    %v1509 = vextract.low.u32 %v1508
    %v1510 = vextract.high.u32 %v1508
    %v1511 = vmul.u32.u64.compose %v1507, %v1502
    %v1512 = vextract.low.u32 %v1511
    %v1513 = vextract.high.u32 %v1511
    %v1514 = vmul.u32 %v1507, %v1498
    %v1515 = vadd.s32 %v1510, %v1512
    %vm1516 = vc.u32 %v1510, %v1512
    %v1517 = vadd.s32 %v1513, 1
    %v1518 = vsel %vm1516, %v1517, %v1513
    %v1519 = vadd.s32 %v1514, %v1518
    %v1520 = vadd.s32 %v1519, 536870912
    %v1521 = vshrl.u32 %v1520, 30
    %v1522 = vshll.u32 %v1521, 30
    %v1523 = vsub.s32 %v1519, %v1522
    %vm1524 = vcmp.lt.s32.totalorder %v1523, 0
    %v1525 = vsub.s32 0, %v1523
    %v1526 = vsel %vm1524, %v1525, %v1523
    %v1527 = vclz %v1526
    %v1528 = vsub.s32 %v1527, 2
    %vm1529 = vcmp.gt.s32.totalorder 0, %v1528
    %v1530 = vsel %vm1529, 0, %v1528
    %v1531 = vsub.s32 32, %v1530
    %v1532 = vshll.u32 %v1523, %v1530
    %v1533 = vshrl.u32 %v1515, %v1531
    %v1534 = vor.u32 %v1532, %v1533
    %v1535 = vsub.s32 4294967266, %v1530
    %v1536 = vadd.s32 %v1535, 127
    %v1537 = vshll.u32 %v1536, 23
    %v1538 = vor.u32 4788187, %v1537
    %v1539 = vand.u32 2147483647, %v1538
    %v1541 = vcvt.s32.f32 %v1534
    %v1542 = vmul.f32 %v1541, %v1539
    %v1543 = vxor.u32 %v1542, 2147483648
    %v1544 = vsel %vm1461, %v1543, %v1542
    %v1545 = vsub.s32 4, %v1521
    %v1546 = vsel %vm1461, %v1545, %v1521
    %v1547 = vsel %vm1460, %v1039, %v1544
    %v1548 = vsel %vm1460, 0, %v1546
    %v1549 = vcosq.f32.pop %v1547
    %v1550 = vsinq.f32.pop %v1547
    %vm1551 = vweird.f32 %v1039
    %v1552 = vadd.s32 %v1548, 3
    %v1553 = vand.u32 %v1552, 3
    %vm1554 = vcmp.lt.s32.totalorder %v1553, 2
    %vm1555 = vcmp.eq.s32.totalorder %v1553, 0
    %v1556 = vxor.u32 %v1550, 2147483648
    %v1557 = vsel %vm1555, %v1549, %v1556
    %vm1558 = vcmp.eq.s32.totalorder %v1553, 2
    %v1559 = vxor.u32 %v1549, 2147483648
    %v1560 = vsel %vm1558, %v1559, %v1550
    %v1561 = vsel %vm1554, %v1557, %v1560
    %v1562 = vsel %vm1551, nan, %v1561
    %v1563 = vand.u32 2147483647, %v1040
    %vm1564 = vcmp.le.f32.partialorder %v1563, 0.7853982
    %vm1565 = vcmp.lt.s32.totalorder %v1040, 0
    %v1566 = vand.u32 %v1040, 2139095040
    %v1567 = vshrl.u32 %v1566, 23
    %v1568 = vsub.s32 %v1567, 127
    %v1569 = vand.u32 2147483647, %v1040
    %v1570 = vand.u32 %v1569, 8388607
    %v1571 = vor.u32 %v1570, 8388608
    %v1572 = vsub.s32 0, %v1571
    %v1573 = vadd.s32 %v1568, 1
    %vm1574 = vcmp.gt.s32.totalorder %v1573, 0
    %v1575 = vsel %vm1574, %v1573, 0
    %v1576 = vshrl.u32 %v1575, 5
    %v1577 = vand.u32 %v1575, 31
    %v1578 = vsub.s32 32, %v1577
    %v1579 = vshrl.u32 683565275, %v1578
    %v1580 = vshll.u32 683565275, %v1577
    %v1581 = vshrl.u32 2475754826, %v1578
    %v1582 = vor.u32 %v1580, %v1581
    %v1583 = vshll.u32 2475754826, %v1577
    %v1584 = vshrl.u32 2131351028, %v1578
    %v1585 = vor.u32 %v1583, %v1584
    %v1586 = vshll.u32 2131351028, %v1577
    %v1587 = vshrl.u32 2102212464, %v1578
    %v1588 = vor.u32 %v1586, %v1587
    %v1589 = vshll.u32 2102212464, %v1577
    %v1590 = vshrl.u32 920167782, %v1578
    %v1591 = vor.u32 %v1589, %v1590
    %v1592 = vshll.u32 920167782, %v1577
    %v1593 = vshrl.u32 1326507024, %v1578
    %v1594 = vor.u32 %v1592, %v1593
    %vm1595 = vcmp.lt.s32.totalorder %v1576, 1
    %vm1596 = vcmp.lt.s32.totalorder %v1576, 2
    %vm1597 = vcmp.lt.s32.totalorder %v1576, 3
    %vm1598 = vcmp.lt.s32.totalorder %v1576, 4
    %v1599 = vsel %vm1595, %v1579, %v1582
    %v1600 = vsel %vm1598, %v1588, 2102212464
    %v1601 = vsel %vm1597, %v1585, %v1600
    %v1602 = vsel %vm1596, %v1599, %v1601
    %v1603 = vsel %vm1595, %v1582, %v1585
    %v1604 = vsel %vm1598, %v1591, 920167782
    %v1605 = vsel %vm1597, %v1588, %v1604
    %v1606 = vsel %vm1596, %v1603, %v1605
    %v1607 = vsel %vm1595, %v1585, %v1588
    %v1608 = vsel %vm1598, %v1594, 1326507024
    %v1609 = vsel %vm1597, %v1591, %v1608
    %v1610 = vsel %vm1596, %v1607, %v1609
    %v1611 = vshll.u32 %v1571, 8
    %v1612 = vmul.u32.u64.compose %v1611, %v1610
    %v1613 = vextract.low.u32 %v1612
    %v1614 = vextract.high.u32 %v1612
    %v1615 = vmul.u32.u64.compose %v1611, %v1606
    %v1616 = vextract.low.u32 %v1615
    %v1617 = vextract.high.u32 %v1615
    %v1618 = vmul.u32 %v1611, %v1602
    %v1619 = vadd.s32 %v1614, %v1616
    %vm1620 = vc.u32 %v1614, %v1616
    %v1621 = vadd.s32 %v1617, 1
    %v1622 = vsel %vm1620, %v1621, %v1617
    %v1623 = vadd.s32 %v1618, %v1622
    %v1624 = vadd.s32 %v1623, 536870912
    %v1625 = vshrl.u32 %v1624, 30
    %v1626 = vshll.u32 %v1625, 30
    %v1627 = vsub.s32 %v1623, %v1626
    %vm1628 = vcmp.lt.s32.totalorder %v1627, 0
    %v1629 = vsub.s32 0, %v1627
    %v1630 = vsel %vm1628, %v1629, %v1627
    %v1631 = vclz %v1630
    %v1632 = vsub.s32 %v1631, 2
    %vm1633 = vcmp.gt.s32.totalorder 0, %v1632
    %v1634 = vsel %vm1633, 0, %v1632
    %v1635 = vsub.s32 32, %v1634
    %v1636 = vshll.u32 %v1627, %v1634
    %v1637 = vshrl.u32 %v1619, %v1635
    %v1638 = vor.u32 %v1636, %v1637
    %v1639 = vsub.s32 4294967266, %v1634
    %v1640 = vadd.s32 %v1639, 127
    %v1641 = vshll.u32 %v1640, 23
    %v1642 = vor.u32 4788187, %v1641
    %v1643 = vand.u32 2147483647, %v1642
    %v1645 = vcvt.s32.f32 %v1638
    %v1646 = vmul.f32 %v1645, %v1643
    %v1647 = vxor.u32 %v1646, 2147483648
    %v1648 = vsel %vm1565, %v1647, %v1646
    %v1649 = vsub.s32 4, %v1625
    %v1650 = vsel %vm1565, %v1649, %v1625
    %v1651 = vsel %vm1564, %v1040, %v1648
    %v1652 = vsel %vm1564, 0, %v1650
    %v1653 = vcosq.f32.pop %v1651
    %v1654 = vsinq.f32.pop %v1651
    %vm1655 = vweird.f32 %v1040
    %v1656 = vadd.s32 %v1652, 3
    %v1657 = vand.u32 %v1656, 3
    %vm1658 = vcmp.lt.s32.totalorder %v1657, 2
    %vm1659 = vcmp.eq.s32.totalorder %v1657, 0
    %v1660 = vxor.u32 %v1654, 2147483648
    %v1661 = vsel %vm1659, %v1653, %v1660
    %vm1662 = vcmp.eq.s32.totalorder %v1657, 2
    %v1663 = vxor.u32 %v1653, 2147483648
    %v1664 = vsel %vm1662, %v1663, %v1654
    %v1665 = vsel %vm1658, %v1661, %v1664
    %v1666 = vsel %vm1655, nan, %v1665
    %v1667 = vand.u32 2147483647, %v1041
    %vm1668 = vcmp.le.f32.partialorder %v1667, 0.7853982
    %vm1669 = vcmp.lt.s32.totalorder %v1041, 0
    %v1670 = vand.u32 %v1041, 2139095040
    %v1671 = vshrl.u32 %v1670, 23
    %v1672 = vsub.s32 %v1671, 127
    %v1673 = vand.u32 2147483647, %v1041
    %v1674 = vand.u32 %v1673, 8388607
    %v1675 = vor.u32 %v1674, 8388608
    %v1676 = vsub.s32 0, %v1675
    %v1677 = vadd.s32 %v1672, 1
    %vm1678 = vcmp.gt.s32.totalorder %v1677, 0
    %v1679 = vsel %vm1678, %v1677, 0
    %v1680 = vshrl.u32 %v1679, 5
    %v1681 = vand.u32 %v1679, 31
    %v1682 = vsub.s32 32, %v1681
    %v1683 = vshrl.u32 683565275, %v1682
    %v1684 = vshll.u32 683565275, %v1681
    %v1685 = vshrl.u32 2475754826, %v1682
    %v1686 = vor.u32 %v1684, %v1685
    %v1687 = vshll.u32 2475754826, %v1681
    %v1688 = vshrl.u32 2131351028, %v1682
    %v1689 = vor.u32 %v1687, %v1688
    %v1690 = vshll.u32 2131351028, %v1681
    %v1691 = vshrl.u32 2102212464, %v1682
    %v1692 = vor.u32 %v1690, %v1691
    %v1693 = vshll.u32 2102212464, %v1681
    %v1694 = vshrl.u32 920167782, %v1682
    %v1695 = vor.u32 %v1693, %v1694
    %v1696 = vshll.u32 920167782, %v1681
    %v1697 = vshrl.u32 1326507024, %v1682
    %v1698 = vor.u32 %v1696, %v1697
    %vm1699 = vcmp.lt.s32.totalorder %v1680, 1
    %vm1700 = vcmp.lt.s32.totalorder %v1680, 2
    %vm1701 = vcmp.lt.s32.totalorder %v1680, 3
    %vm1702 = vcmp.lt.s32.totalorder %v1680, 4
    %v1703 = vsel %vm1699, %v1683, %v1686
    %v1704 = vsel %vm1702, %v1692, 2102212464
    %v1705 = vsel %vm1701, %v1689, %v1704
    %v1706 = vsel %vm1700, %v1703, %v1705
    %v1707 = vsel %vm1699, %v1686, %v1689
    %v1708 = vsel %vm1702, %v1695, 920167782
    %v1709 = vsel %vm1701, %v1692, %v1708
    %v1710 = vsel %vm1700, %v1707, %v1709
    %v1711 = vsel %vm1699, %v1689, %v1692
    %v1712 = vsel %vm1702, %v1698, 1326507024
    %v1713 = vsel %vm1701, %v1695, %v1712
    %v1714 = vsel %vm1700, %v1711, %v1713
    %v1715 = vshll.u32 %v1675, 8
    %v1716 = vmul.u32.u64.compose %v1715, %v1714
    %v1717 = vextract.low.u32 %v1716
    %v1718 = vextract.high.u32 %v1716
    %v1719 = vmul.u32.u64.compose %v1715, %v1710
    %v1720 = vextract.low.u32 %v1719
    %v1721 = vextract.high.u32 %v1719
    %v1722 = vmul.u32 %v1715, %v1706
    %v1723 = vadd.s32 %v1718, %v1720
    %vm1724 = vc.u32 %v1718, %v1720
    %v1725 = vadd.s32 %v1721, 1
    %v1726 = vsel %vm1724, %v1725, %v1721
    %v1727 = vadd.s32 %v1722, %v1726
    %v1728 = vadd.s32 %v1727, 536870912
    %v1729 = vshrl.u32 %v1728, 30
    %v1730 = vshll.u32 %v1729, 30
    %v1731 = vsub.s32 %v1727, %v1730
    %vm1732 = vcmp.lt.s32.totalorder %v1731, 0
    %v1733 = vsub.s32 0, %v1731
    %v1734 = vsel %vm1732, %v1733, %v1731
    %v1735 = vclz %v1734
    %v1736 = vsub.s32 %v1735, 2
    %vm1737 = vcmp.gt.s32.totalorder 0, %v1736
    %v1738 = vsel %vm1737, 0, %v1736
    %v1739 = vsub.s32 32, %v1738
    %v1740 = vshll.u32 %v1731, %v1738
    %v1741 = vshrl.u32 %v1723, %v1739
    %v1742 = vor.u32 %v1740, %v1741
    %v1743 = vsub.s32 4294967266, %v1738
    %v1744 = vadd.s32 %v1743, 127
    %v1745 = vshll.u32 %v1744, 23
    %v1746 = vor.u32 4788187, %v1745
    %v1747 = vand.u32 2147483647, %v1746
    %v1749 = vcvt.s32.f32 %v1742
    %v1750 = vmul.f32 %v1749, %v1747
    %v1751 = vxor.u32 %v1750, 2147483648
    %v1752 = vsel %vm1669, %v1751, %v1750
    %v1753 = vsub.s32 4, %v1729
    %v1754 = vsel %vm1669, %v1753, %v1729
    %v1755 = vsel %vm1668, %v1041, %v1752
    %v1756 = vsel %vm1668, 0, %v1754
    %v1757 = vcosq.f32.pop %v1755
    %v1758 = vsinq.f32.pop %v1755
    %vm1759 = vweird.f32 %v1041
    %v1760 = vadd.s32 %v1756, 3
    %v1761 = vand.u32 %v1760, 3
    %vm1762 = vcmp.lt.s32.totalorder %v1761, 2
    %vm1763 = vcmp.eq.s32.totalorder %v1761, 0
    %v1764 = vxor.u32 %v1758, 2147483648
    %v1765 = vsel %vm1763, %v1757, %v1764
    %vm1766 = vcmp.eq.s32.totalorder %v1761, 2
    %v1767 = vxor.u32 %v1757, 2147483648
    %v1768 = vsel %vm1766, %v1767, %v1758
    %v1769 = vsel %vm1762, %v1765, %v1768
    %v1770 = vsel %vm1759, nan, %v1769
    %v1771 = vand.u32 2147483647, %v1042
    %vm1772 = vcmp.le.f32.partialorder %v1771, 0.7853982
    %vm1773 = vcmp.lt.s32.totalorder %v1042, 0
    %v1774 = vand.u32 %v1042, 2139095040
    %v1775 = vshrl.u32 %v1774, 23
    %v1776 = vsub.s32 %v1775, 127
    %v1777 = vand.u32 2147483647, %v1042
    %v1778 = vand.u32 %v1777, 8388607
    %v1779 = vor.u32 %v1778, 8388608
    %v1780 = vsub.s32 0, %v1779
    %v1781 = vadd.s32 %v1776, 1
    %vm1782 = vcmp.gt.s32.totalorder %v1781, 0
    %v1783 = vsel %vm1782, %v1781, 0
    %v1784 = vshrl.u32 %v1783, 5
    %v1785 = vand.u32 %v1783, 31
    %v1786 = vsub.s32 32, %v1785
    %v1787 = vshrl.u32 683565275, %v1786
    %v1788 = vshll.u32 683565275, %v1785
    %v1789 = vshrl.u32 2475754826, %v1786
    %v1790 = vor.u32 %v1788, %v1789
    %v1791 = vshll.u32 2475754826, %v1785
    %v1792 = vshrl.u32 2131351028, %v1786
    %v1793 = vor.u32 %v1791, %v1792
    %v1794 = vshll.u32 2131351028, %v1785
    %v1795 = vshrl.u32 2102212464, %v1786
    %v1796 = vor.u32 %v1794, %v1795
    %v1797 = vshll.u32 2102212464, %v1785
    %v1798 = vshrl.u32 920167782, %v1786
    %v1799 = vor.u32 %v1797, %v1798
    %v1800 = vshll.u32 920167782, %v1785
    %v1801 = vshrl.u32 1326507024, %v1786
    %v1802 = vor.u32 %v1800, %v1801
    %vm1803 = vcmp.lt.s32.totalorder %v1784, 1
    %vm1804 = vcmp.lt.s32.totalorder %v1784, 2
    %vm1805 = vcmp.lt.s32.totalorder %v1784, 3
    %vm1806 = vcmp.lt.s32.totalorder %v1784, 4
    %v1807 = vsel %vm1803, %v1787, %v1790
    %v1808 = vsel %vm1806, %v1796, 2102212464
    %v1809 = vsel %vm1805, %v1793, %v1808
    %v1810 = vsel %vm1804, %v1807, %v1809
    %v1811 = vsel %vm1803, %v1790, %v1793
    %v1812 = vsel %vm1806, %v1799, 920167782
    %v1813 = vsel %vm1805, %v1796, %v1812
    %v1814 = vsel %vm1804, %v1811, %v1813
    %v1815 = vsel %vm1803, %v1793, %v1796
    %v1816 = vsel %vm1806, %v1802, 1326507024
    %v1817 = vsel %vm1805, %v1799, %v1816
    %v1818 = vsel %vm1804, %v1815, %v1817
    %v1819 = vshll.u32 %v1779, 8
    %v1820 = vmul.u32.u64.compose %v1819, %v1818
    %v1821 = vextract.low.u32 %v1820
    %v1822 = vextract.high.u32 %v1820
    %v1823 = vmul.u32.u64.compose %v1819, %v1814
    %v1824 = vextract.low.u32 %v1823
    %v1825 = vextract.high.u32 %v1823
    %v1826 = vmul.u32 %v1819, %v1810
    %v1827 = vadd.s32 %v1822, %v1824
    %vm1828 = vc.u32 %v1822, %v1824
    %v1829 = vadd.s32 %v1825, 1
    %v1830 = vsel %vm1828, %v1829, %v1825
    %v1831 = vadd.s32 %v1826, %v1830
    %v1832 = vadd.s32 %v1831, 536870912
    %v1833 = vshrl.u32 %v1832, 30
    %v1834 = vshll.u32 %v1833, 30
    %v1835 = vsub.s32 %v1831, %v1834
    %vm1836 = vcmp.lt.s32.totalorder %v1835, 0
    %v1837 = vsub.s32 0, %v1835
    %v1838 = vsel %vm1836, %v1837, %v1835
    %v1839 = vclz %v1838
    %v1840 = vsub.s32 %v1839, 2
    %vm1841 = vcmp.gt.s32.totalorder 0, %v1840
    %v1842 = vsel %vm1841, 0, %v1840
    %v1843 = vsub.s32 32, %v1842
    %v1844 = vshll.u32 %v1835, %v1842
    %v1845 = vshrl.u32 %v1827, %v1843
    %v1846 = vor.u32 %v1844, %v1845
    %v1847 = vsub.s32 4294967266, %v1842
    %v1848 = vadd.s32 %v1847, 127
    %v1849 = vshll.u32 %v1848, 23
    %v1850 = vor.u32 4788187, %v1849
    %v1851 = vand.u32 2147483647, %v1850
    %v1853 = vcvt.s32.f32 %v1846
    %v1854 = vmul.f32 %v1853, %v1851
    %v1855 = vxor.u32 %v1854, 2147483648
    %v1856 = vsel %vm1773, %v1855, %v1854
    %v1857 = vsub.s32 4, %v1833
    %v1858 = vsel %vm1773, %v1857, %v1833
    %v1859 = vsel %vm1772, %v1042, %v1856
    %v1860 = vsel %vm1772, 0, %v1858
    %v1861 = vcosq.f32.pop %v1859
    %v1862 = vsinq.f32.pop %v1859
    %vm1863 = vweird.f32 %v1042
    %v1864 = vadd.s32 %v1860, 3
    %v1865 = vand.u32 %v1864, 3
    %vm1866 = vcmp.lt.s32.totalorder %v1865, 2
    %vm1867 = vcmp.eq.s32.totalorder %v1865, 0
    %v1868 = vxor.u32 %v1862, 2147483648
    %v1869 = vsel %vm1867, %v1861, %v1868
    %vm1870 = vcmp.eq.s32.totalorder %v1865, 2
    %v1871 = vxor.u32 %v1861, 2147483648
    %v1872 = vsel %vm1870, %v1871, %v1862
    %v1873 = vsel %vm1866, %v1869, %v1872
    %v1874 = vsel %vm1863, nan, %v1873
    %1875 = vst [vmem:[#allocation8] sm:$0xff] %v1146
    %1876 = vst [vmem:[#allocation8 + $0x8] sm:$0xff] %v1250
    %1877 = vst [vmem:[#allocation8 + $0x10] sm:$0xff] %v1354
    %1878 = vst [vmem:[#allocation8 + $0x18] sm:$0xff] %v1458
    %1879 = vst [vmem:[#allocation8 + $0x20] sm:$0xff] %v1562
    %1880 = vst [vmem:[#allocation8 + $0x28] sm:$0xff] %v1666
    %1881 = vst [vmem:[#allocation8 + $0x30] sm:$0xff] %v1770
    %1882 = vst [vmem:[#allocation8 + $0x38] sm:$0xff] %v1874
    // Predicated region
    $region26: #{tpu_custom_call.1} parent=1 // pred_check
      _
    $region27: #{tpu_custom_call.1} parent=1 // pred_check_branch
      %1884 = sbr.rel (0) target = $region29
    $region28: #{tpu_custom_call.1} parent=1 // pred_region
      %s1886 = ssub.s32 1024, 1024
      %1887 = vsyncadd [#allocation4], %s1886
      %s1889 = sshll.u32 [#allocation8], 4
      %s1890 = int_to_ptr.vmem [resolvable:$true] %s1889
      %1892 = dma.vmem_to_hbm [thread:$0]  %s1890, 1024, %s3, [#allocation4]
    $region29: #{tpu_custom_call.1} parent=1 // pred_fallthru
      _
    // Predicated region
    $region30: #{tpu_custom_call.1} parent=1 // pred_check
      _
    $region31: #{tpu_custom_call.1} parent=1 // pred_check_branch
      %1894 = sbr.rel (0) target = $region33
    $region32: #{tpu_custom_call.1} parent=1 // pred_region
      %1895 = dma.done [#allocation4], 1024
    $region33: #{tpu_custom_call.1} parent=1 // pred_fallthru
      _
    %1896 = vsyncpa [#allocation3], 1
    %1897 = vsyncpa [#allocation6], 1
    %1898 = vsyncpa [#allocation4], 1

</llo_original>
